<compile_context>
chip_gen: v5e
topology: v5e:2x2
jax: 0.10.0
libtpu: 0.0.40
codegen_flags: <defaults>
</compile_context>

<pallas_src>
import functools
import math

import jax
import jax.numpy as jnp
from jax.experimental import pallas as pl
from jax.experimental.pallas import tpu as pltpu

# ----------------------- model dimensions (small, synthetic) ----------------
B = 2            # batch
S = 8            # sequence length
H = 32           # hidden size
NH = 4           # attention heads
DH = H // NH     # head dim
FFN = 64         # intermediate size
LAYERS = 2
VOCAB = 100
TYPE_VOCAB = 2
MAX_POS = 16
LN_EPS = 1e-7    # config.update({'layer_norm_eps': 1e-07})


# ------------------------------ in-kernel helpers ----------------------------
def _ln(x, g, b, eps):
    mu = jnp.mean(x, axis=-1, keepdims=True)
    d = x - mu
    var = jnp.mean(d * d, axis=-1, keepdims=True)
    return d * jax.lax.rsqrt(var + eps) * g + b


def _gelu(y):
    # tanh-approximation GELU: the bulk of the work is one tanh on the EUP slot.
    # TODO(synk): HF BERT default is exact erf GELU; tanh approx deviates ~1e-3.
    return 0.5 * y * (1.0 + jnp.tanh(0.7978845608028654 * (y + 0.044715 * y * y * y)))


# ---------------------- fused embedding-layernorm kernel ---------------------
def _embed_ln_kernel(x_ref, g_ref, b_ref, o_ref, *, eps):
    o_ref[...] = _ln(x_ref[...], g_ref[...], b_ref[...], eps)


def pallas_embed_ln(x, gamma, beta):
    M, Hd = x.shape
    return pl.pallas_call(
        functools.partial(_embed_ln_kernel, eps=LN_EPS),
        out_shape=jax.ShapeDtypeStruct((M, Hd), jnp.float32),
    )(x, gamma, beta)


# ------------------- fused encoder layer (one pallas_call) -------------------
def _encoder_layer_kernel(x_ref, mask_ref,
                          wqkv_ref, bqkv_ref, wo_ref, bo_ref,
                          ln1g_ref, ln1b_ref,
                          w1_ref, b1_ref, w2_ref, b2_ref,
                          ln2g_ref, ln2b_ref,
                          o_ref, *, scale, eps):
    x = x_ref[0]                               # (S, H)
    bias = (1.0 - mask_ref[0]) * -1e9          # (1, S) additive key-padding mask

    # Fused QKV projection: a single MXU pass [S,H] @ [H,3H]
    qkv = jnp.dot(x, wqkv_ref[...], preferred_element_type=jnp.float32) + bqkv_ref[...]

    # Per-head attention on lane-contiguous slices; NH=4 statically unrolled.
    ctx_heads = []
    for h in range(NH):
        qh = qkv[:, h * DH:(h + 1) * DH]                   # (S, DH)
        kh = qkv[:, H + h * DH:H + (h + 1) * DH]           # (S, DH)
        vh = qkv[:, 2 * H + h * DH:2 * H + (h + 1) * DH]   # (S, DH)
        s = jax.lax.dot_general(qh, kh, (((1,), (1,)), ((), ())),
                                preferred_element_type=jnp.float32) * scale
        s = s + bias
        s = s - jnp.max(s, axis=-1, keepdims=True)
        p = jnp.exp(s)
        # softmax denominator via approx reciprocal -> EUP slot (free vs VALU div)
        p = p * pl.reciprocal(jnp.sum(p, axis=-1, keepdims=True), approx=True)
        ctx_heads.append(jnp.dot(p, vh, preferred_element_type=jnp.float32))
    ctx = jnp.concatenate(ctx_heads, axis=-1)              # (S, H)

    attn_out = jnp.dot(ctx, wo_ref[...], preferred_element_type=jnp.float32) + bo_ref[...]
    h1 = _ln(x + attn_out, ln1g_ref[...], ln1b_ref[...], eps)      # fused residual + LN

    ffn = _gelu(jnp.dot(h1, w1_ref[...], preferred_element_type=jnp.float32) + b1_ref[...])
    ffn = jnp.dot(ffn, w2_ref[...], preferred_element_type=jnp.float32) + b2_ref[...]
    o_ref[0] = _ln(h1 + ffn, ln2g_ref[...], ln2b_ref[...], eps)    # fused residual + LN


def pallas_encoder_layer(x, mask3, lyr):
    Bq = x.shape[0]

    def full(shape):
        # whole-array block, resident across grid steps (same block index each step)
        return pl.BlockSpec(shape, lambda b: (0,) * len(shape))

    kernel = functools.partial(_encoder_layer_kernel,
                               scale=1.0 / math.sqrt(DH), eps=LN_EPS)
    # TODO(synk): at real PatentSBERTa sizes (H=768, FFN=3072, S<=512) add K/N
    # grid tiling with accumulator scratch and bf16 operands (f32 accumulation);
    # single-block weights are fine at these toy sizes and stay in VMEM.
    return pl.pallas_call(
        kernel,
        out_shape=jax.ShapeDtypeStruct((Bq, S, H), jnp.float32),
        grid=(Bq,),
        in_specs=[
            pl.BlockSpec((1, S, H), lambda b: (b, 0, 0)),   # activations, per batch
            pl.BlockSpec((1, 1, S), lambda b: (b, 0, 0)),   # attention mask, per batch
            full((H, 3 * H)), full((1, 3 * H)),             # fused QKV
            full((H, H)), full((1, H)),                     # attn output proj
            full((1, H)), full((1, H)),                     # LN1
            full((H, FFN)), full((1, FFN)),                 # FFN in
            full((FFN, H)), full((1, H)),                   # FFN out
            full((1, H)), full((1, H)),                     # LN2
        ],
        out_specs=pl.BlockSpec((1, S, H), lambda b: (b, 0, 0)),
        compiler_params=pltpu.CompilerParams(dimension_semantics=("parallel",)),
    )(x, mask3, lyr["wqkv"], lyr["bqkv"], lyr["wo"], lyr["bo"],
      lyr["ln1_g"], lyr["ln1_b"], lyr["w1"], lyr["b1"], lyr["w2"], lyr["b2"],
      lyr["ln2_g"], lyr["ln2_b"])


# ----------------- fused pooler + regression head + MSE loss -----------------
def _pooler_head_kernel(cls_ref, wp_ref, bp_ref, wout_ref, bout_ref, tgt_ref,
                        logit_ref, loss_ref):
    pooled = jnp.tanh(jnp.dot(cls_ref[...], wp_ref[...],
                              preferred_element_type=jnp.float32) + bp_ref[...])
    # Eval-mode dropout is identity: the 5 dropout branches through the shared
    # Linear(H,1) head are identical, so their average equals one application,
    # and the averaged MSE equals a single MSE.
    logits = jnp.sum(pooled * wout_ref[...], axis=-1, keepdims=True) + bout_ref[...]
    logit_ref[...] = logits                                    # (B, 1)
    d = logits - tgt_ref[...]
    loss_ref[...] = jnp.sum(d * d, axis=0, keepdims=True) * (1.0 / d.shape[0])


def pallas_pooler_head(cls, wp, bp, wout_row, bout, tgt):
    Bq = cls.shape[0]
    return pl.pallas_call(
        _pooler_head_kernel,
        out_shape=(jax.ShapeDtypeStruct((Bq, 1), jnp.float32),
                   jax.ShapeDtypeStruct((1, 1), jnp.float32)),
    )(cls, wp, bp, wout_row, bout, tgt)


# ------------------------------- parameters ----------------------------------
def init_params(key):
    def nrm(k, shape, scale=0.02):
        return scale * jax.random.normal(k, shape, jnp.float32)

    keys = iter(jax.random.split(key, 8 * LAYERS + 8))
    params = {
        "word_emb": nrm(next(keys), (VOCAB, H)),
        "pos_emb": nrm(next(keys), (MAX_POS, H)),
        "type_emb": nrm(next(keys), (TYPE_VOCAB, H)),
        "emb_ln_g": jnp.ones((1, H), jnp.float32),
        "emb_ln_b": jnp.zeros((1, H), jnp.float32),
        "layers": [],
        # pooler (hidden[1] in HF return_dict=False convention)
        "wp": nrm(next(keys), (H, H)),
        "bp": jnp.zeros((1, H), jnp.float32),
        # self.out = nn.Linear(hidden_size, 1), stored row-major for a lane reduce
        "w_out_row": nrm(next(keys), (1, H)),
        "b_out": jnp.zeros((1, 1), jnp.float32),
    }
    for _ in range(LAYERS):
        wq = nrm(next(keys), (H, H))
        wk = nrm(next(keys), (H, H))
        wv = nrm(next(keys), (H, H))
        params["layers"].append({
            "wqkv": jnp.concatenate([wq, wk, wv], axis=1),        # fused [H, 3H]
            "bqkv": jnp.zeros((1, 3 * H), jnp.float32),
            "wo": nrm(next(keys), (H, H)), "bo": jnp.zeros((1, H), jnp.float32),
            "ln1_g": jnp.ones((1, H), jnp.float32), "ln1_b": jnp.zeros((1, H), jnp.float32),
            "w1": nrm(next(keys), (H, FFN)), "b1": jnp.zeros((1, FFN), jnp.float32),
            "w2": nrm(next(keys), (FFN, H)), "b2": jnp.zeros((1, H), jnp.float32),
            "ln2_g": jnp.ones((1, H), jnp.float32), "ln2_b": jnp.zeros((1, H), jnp.float32),
        })
    return params


# ------------------------------ forward pass ---------------------------------
def model_forward(params, input_ids, attention_mask, targets=None):
    Bq, Sq = input_ids.shape
    mask3 = attention_mask.astype(jnp.float32).reshape(Bq, 1, Sq)

    # Embeddings: token-id gather stays in JAX glue; add + LayerNorm in Pallas.
    # token_type_ids are all zero for this task -> segment-0 embedding only.
    emb = (params["word_emb"][input_ids]
           + params["pos_emb"][None, :Sq, :]
           + params["type_emb"][0][None, None, :])
    x = pallas_embed_ln(emb.reshape(Bq * Sq, H),
                        params["emb_ln_g"], params["emb_ln_b"])
    x = x.reshape(Bq, Sq, H)

    # One fused pallas_call per encoder layer; everything stays in VMEM.
    for lyr in params["layers"]:
        x = pallas_encoder_layer(x, mask3, lyr)

    cls = x[:, 0, :]                                          # (B, H)
    tgt = targets if targets is not None else jnp.zeros((Bq,), jnp.float32)
    logits2d, loss2d = pallas_pooler_head(
        cls, params["wp"], params["bp"],
        params["w_out_row"], params["b_out"], tgt.reshape(Bq, 1))

    logits = logits2d.reshape(-1)
    loss = loss2d[0, 0] if targets is not None else jnp.float32(0.0)
    return logits, loss


# --------------------------------- main ---------------------------------------
if __name__ == "__main__":
    key = jax.random.PRNGKey(0)
    k_params, k_ids, k_tgt = jax.random.split(key, 3)

    params = init_params(k_params)

    input_ids = jax.random.randint(k_ids, (B, S), 0, VOCAB, dtype=jnp.int32)
    # second sequence has two padded positions to exercise the attention mask
    attention_mask = jnp.array(
        [[1, 1, 1, 1, 1, 1, 1, 1],
         [1, 1, 1, 1, 1, 1, 0, 0]], dtype=jnp.int32)
    targets = jax.random.uniform(k_tgt, (B,), jnp.float32)

    fwd = jax.jit(model_forward)
    logits, loss = fwd(params, input_ids, attention_mask, targets)
    jax.block_until_ready((logits, loss))

    assert logits.shape == (B,)
    assert bool(jnp.all(jnp.isfinite(logits)))
    assert jnp.isfinite(loss)
    print("KERNEL_OK")
</pallas_src>

<mosaic_0001>
module attributes {stable_mosaic.version = 11 : i64} {
  func.func @_embed_ln_kernel(%arg0: memref<16x32xf32, #tpu.memory_space<vmem>>, %arg1: memref<1x32xf32, #tpu.memory_space<vmem>>, %arg2: memref<1x32xf32, #tpu.memory_space<vmem>>, %arg3: memref<16x32xf32, #tpu.memory_space<vmem>>) attributes {dimension_semantics = [], scalar_prefetch = 0 : i64, scratch_operands = 0 : i64, tpu.core_type = #tpu.core_type<tc>} {
    %c0 = arith.constant 0 : index
    %c0_0 = arith.constant 0 : index
    %0 = vector.load %arg0[%c0, %c0_0] : memref<16x32xf32, #tpu.memory_space<vmem>>, vector<16x32xf32>
    %c0_1 = arith.constant 0 : index
    %c0_2 = arith.constant 0 : index
    %1 = vector.load %arg1[%c0_1, %c0_2] : memref<1x32xf32, #tpu.memory_space<vmem>>, vector<1x32xf32>
    %c0_3 = arith.constant 0 : index
    %c0_4 = arith.constant 0 : index
    %2 = vector.load %arg2[%c0_3, %c0_4] : memref<1x32xf32, #tpu.memory_space<vmem>>, vector<1x32xf32>
    %cst = arith.constant dense<0.000000e+00> : vector<16xf32>
    %3 = vector.multi_reduction <add>, %0, %cst [1] : vector<16x32xf32> to vector<16xf32>
    %4 = vector.shape_cast %3 : vector<16xf32> to vector<16x1xf32>
    %cst_5 = arith.constant 3.200000e+01 : f32
    %5 = vector.broadcast %cst_5 : f32 to vector<16x1xf32>
    %6 = arith.divf %4, %5 : vector<16x1xf32>
    %7 = vector.broadcast %6 : vector<16x1xf32> to vector<16x32xf32>
    %8 = arith.subf %0, %7 : vector<16x32xf32>
    %9 = arith.mulf %8, %8 : vector<16x32xf32>
    %cst_6 = arith.constant dense<0.000000e+00> : vector<16xf32>
    %10 = vector.multi_reduction <add>, %9, %cst_6 [1] : vector<16x32xf32> to vector<16xf32>
    %11 = vector.shape_cast %10 : vector<16xf32> to vector<16x1xf32>
    %cst_7 = arith.constant 3.200000e+01 : f32
    %12 = vector.broadcast %cst_7 : f32 to vector<16x1xf32>
    %13 = arith.divf %11, %12 : vector<16x1xf32>
    %cst_8 = arith.constant 1.000000e-07 : f32
    %14 = vector.broadcast %cst_8 : f32 to vector<16x1xf32>
    %15 = arith.addf %13, %14 : vector<16x1xf32>
    %16 = math.rsqrt %15 : vector<16x1xf32>
    %17 = vector.broadcast %16 : vector<16x1xf32> to vector<16x32xf32>
    %18 = arith.mulf %8, %17 : vector<16x32xf32>
    %19 = vector.broadcast %1 : vector<1x32xf32> to vector<16x32xf32>
    %20 = arith.mulf %18, %19 : vector<16x32xf32>
    %21 = vector.broadcast %2 : vector<1x32xf32> to vector<16x32xf32>
    %22 = arith.addf %20, %21 : vector<16x32xf32>
    %c0_9 = arith.constant 0 : index
    %c0_10 = arith.constant 0 : index
    %23 = vector.load %arg3[%c0_9, %c0_10] : memref<16x32xf32, #tpu.memory_space<vmem>>, vector<16x32xf32>
    tpu.vector_store %arg3[%c0_9, %c0_10], %22 {strides = array<i32>} : memref<16x32xf32, #tpu.memory_space<vmem>>, vector<16x32xf32>,
    return
  }
}

module attributes {stable_mosaic.version = 11 : i64} {
  func.func @_pooler_head_kernel(%arg0: memref<2x32xf32, #tpu.memory_space<vmem>>, %arg1: memref<32x32xf32, #tpu.memory_space<vmem>>, %arg2: memref<1x32xf32, #tpu.memory_space<vmem>>, %arg3: memref<1x32xf32, #tpu.memory_space<vmem>>, %arg4: memref<1x1xf32, #tpu.memory_space<vmem>>, %arg5: memref<2x1xf32, #tpu.memory_space<vmem>>, %arg6: memref<2x1xf32, #tpu.memory_space<vmem>>, %arg7: memref<1x1xf32, #tpu.memory_space<vmem>>) attributes {dimension_semantics = [], scalar_prefetch = 0 : i64, scratch_operands = 0 : i64, tpu.core_type = #tpu.core_type<tc>} {
    %c0 = arith.constant 0 : index
    %c0_0 = arith.constant 0 : index
    %0 = vector.load %arg0[%c0, %c0_0] : memref<2x32xf32, #tpu.memory_space<vmem>>, vector<2x32xf32>
    %c0_1 = arith.constant 0 : index
    %c0_2 = arith.constant 0 : index
    %1 = vector.load %arg1[%c0_1, %c0_2] : memref<32x32xf32, #tpu.memory_space<vmem>>, vector<32x32xf32>
    %cst = arith.constant dense<0.000000e+00> : vector<2x32xf32>
    %2 = tpu.matmul %0, %1, %cst {dimension_numbers = #tpu.dot_dimension_numbers<[1], [0], [0], [1], [0, 0, 1, 1], [], []>} : vector<2x32xf32>, vector<32x32xf32>, vector<2x32xf32> -> vector<2x32xf32>
    %c0_3 = arith.constant 0 : index
    %c0_4 = arith.constant 0 : index
    %3 = vector.load %arg2[%c0_3, %c0_4] : memref<1x32xf32, #tpu.memory_space<vmem>>, vector<1x32xf32>
    %4 = vector.broadcast %3 : vector<1x32xf32> to vector<2x32xf32>
    %5 = arith.addf %2, %4 : vector<2x32xf32>
    %6 = math.tanh %5 : vector<2x32xf32>
    %c0_5 = arith.constant 0 : index
    %c0_6 = arith.constant 0 : index
    %7 = vector.load %arg3[%c0_5, %c0_6] : memref<1x32xf32, #tpu.memory_space<vmem>>, vector<1x32xf32>
    %8 = vector.broadcast %7 : vector<1x32xf32> to vector<2x32xf32>
    %9 = arith.mulf %6, %8 : vector<2x32xf32>
    %cst_7 = arith.constant dense<0.000000e+00> : vector<2xf32>
    %10 = vector.multi_reduction <add>, %9, %cst_7 [1] : vector<2x32xf32> to vector<2xf32>
    %11 = vector.shape_cast %10 : vector<2xf32> to vector<2x1xf32>
    %c0_8 = arith.constant 0 : index
    %c0_9 = arith.constant 0 : index
    %12 = vector.load %arg4[%c0_8, %c0_9] : memref<1x1xf32, #tpu.memory_space<vmem>>, vector<1x1xf32>
    %13 = vector.broadcast %12 : vector<1x1xf32> to vector<2x1xf32>
    %14 = arith.addf %11, %13 : vector<2x1xf32>
    %c0_10 = arith.constant 0 : index
    %c0_11 = arith.constant 0 : index
    %15 = vector.load %arg6[%c0_10, %c0_11] : memref<2x1xf32, #tpu.memory_space<vmem>>, vector<2x1xf32>
    tpu.vector_store %arg6[%c0_10, %c0_11], %14 {strides = array<i32>} : memref<2x1xf32, #tpu.memory_space<vmem>>, vector<2x1xf32>,
    %c0_12 = arith.constant 0 : index
    %c0_13 = arith.constant 0 : index
    %16 = vector.load %arg5[%c0_12, %c0_13] : memref<2x1xf32, #tpu.memory_space<vmem>>, vector<2x1xf32>
    %17 = arith.subf %14, %16 : vector<2x1xf32>
    %18 = arith.mulf %17, %17 : vector<2x1xf32>
    %cst_14 = arith.constant dense<0.000000e+00> : vector<1xf32>
    %19 = vector.multi_reduction <add>, %18, %cst_14 [0] : vector<2x1xf32> to vector<1xf32>
    %20 = vector.shape_cast %19 : vector<1xf32> to vector<1x1xf32>
    %cst_15 = arith.constant 5.000000e-01 : f32
    %21 = vector.broadcast %cst_15 : f32 to vector<1x1xf32>
    %22 = arith.mulf %20, %21 : vector<1x1xf32>
    %c0_16 = arith.constant 0 : index
    %c0_17 = arith.constant 0 : index
    %23 = vector.load %arg7[%c0_16, %c0_17] : memref<1x1xf32, #tpu.memory_space<vmem>>, vector<1x1xf32>
    tpu.vector_store %arg7[%c0_16, %c0_17], %22 {strides = array<i32>} : memref<1x1xf32, #tpu.memory_space<vmem>>, vector<1x1xf32>,
    return
  }
}

module attributes {stable_mosaic.version = 11 : i64} {
  func.func @_encoder_layer_kernel(%arg0: i32, %arg1: memref<1x8x32xf32, #tpu.memory_space<vmem>>, %arg2: memref<1x1x8xf32, #tpu.memory_space<vmem>>, %arg3: memref<32x96xf32, #tpu.memory_space<vmem>>, %arg4: memref<1x96xf32, #tpu.memory_space<vmem>>, %arg5: memref<32x32xf32, #tpu.memory_space<vmem>>, %arg6: memref<1x32xf32, #tpu.memory_space<vmem>>, %arg7: memref<1x32xf32, #tpu.memory_space<vmem>>, %arg8: memref<1x32xf32, #tpu.memory_space<vmem>>, %arg9: memref<32x64xf32, #tpu.memory_space<vmem>>, %arg10: memref<1x64xf32, #tpu.memory_space<vmem>>, %arg11: memref<64x32xf32, #tpu.memory_space<vmem>>, %arg12: memref<1x32xf32, #tpu.memory_space<vmem>>, %arg13: memref<1x32xf32, #tpu.memory_space<vmem>>, %arg14: memref<1x32xf32, #tpu.memory_space<vmem>>, %arg15: memref<1x8x32xf32, #tpu.memory_space<vmem>>) attributes {dimension_semantics = [#tpu.dimension_semantics<parallel>], iteration_bounds = array<i64: 2>, scalar_prefetch = 0 : i64, scratch_operands = 0 : i64, tpu.core_type = #tpu.core_type<tc>, window_params = [{transform_indices = @transform_0, window_bounds = array<i64: 1, 8, 32>}, {transform_indices = @transform_1, window_bounds = array<i64: 1, 1, 8>}, {pipeline_mode = #tpu.pipeline_mode<synchronous>, transform_indices = @transform_2, window_bounds = array<i64: 32, 96>}, {pipeline_mode = #tpu.pipeline_mode<synchronous>, transform_indices = @transform_3, window_bounds = array<i64: 1, 96>}, {pipeline_mode = #tpu.pipeline_mode<synchronous>, transform_indices = @transform_4, window_bounds = array<i64: 32, 32>}, {pipeline_mode = #tpu.pipeline_mode<synchronous>, transform_indices = @transform_5, window_bounds = array<i64: 1, 32>}, {pipeline_mode = #tpu.pipeline_mode<synchronous>, transform_indices = @transform_6, window_bounds = array<i64: 1, 32>}, {pipeline_mode = #tpu.pipeline_mode<synchronous>, transform_indices = @transform_7, window_bounds = array<i64: 1, 32>}, {pipeline_mode = #tpu.pipeline_mode<synchronous>, transform_indices = @transform_8, window_bounds = array<i64: 32, 64>}, {pipeline_mode = #tpu.pipeline_mode<synchronous>, transform_indices = @transform_9, window_bounds = array<i64: 1, 64>}, {pipeline_mode = #tpu.pipeline_mode<synchronous>, transform_indices = @transform_10, window_bounds = array<i64: 64, 32>}, {pipeline_mode = #tpu.pipeline_mode<synchronous>, transform_indices = @transform_11, window_bounds = array<i64: 1, 32>}, {pipeline_mode = #tpu.pipeline_mode<synchronous>, transform_indices = @transform_12, window_bounds = array<i64: 1, 32>}, {pipeline_mode = #tpu.pipeline_mode<synchronous>, transform_indices = @transform_13, window_bounds = array<i64: 1, 32>}, {transform_indices = @transform_14, window_bounds = array<i64: 1, 8, 32>}]} {
    %c0 = arith.constant 0 : index
    %c0_0 = arith.constant 0 : index
    %c0_1 = arith.constant 0 : index
    %0 = vector.load %arg1[%c0, %c0_0, %c0_1] : memref<1x8x32xf32, #tpu.memory_space<vmem>>, vector<1x8x32xf32>
    %1 = vector.shape_cast %0 : vector<1x8x32xf32> to vector<8x32xf32>
    %c0_2 = arith.constant 0 : index
    %c0_3 = arith.constant 0 : index
    %c0_4 = arith.constant 0 : index
    %2 = vector.load %arg2[%c0_2, %c0_3, %c0_4] : memref<1x1x8xf32, #tpu.memory_space<vmem>>, vector<1x1x8xf32>
    %3 = vector.shape_cast %2 : vector<1x1x8xf32> to vector<1x8xf32>
    %cst = arith.constant 1.000000e+00 : f32
    %4 = vector.broadcast %cst : f32 to vector<1x8xf32>
    %5 = arith.subf %4, %3 : vector<1x8xf32>
    %cst_5 = arith.constant -1.000000e+09 : f32
    %6 = vector.broadcast %cst_5 : f32 to vector<1x8xf32>
    %7 = arith.mulf %5, %6 : vector<1x8xf32>
    %c0_6 = arith.constant 0 : index
    %c0_7 = arith.constant 0 : index
    %8 = vector.load %arg3[%c0_6, %c0_7] : memref<32x96xf32, #tpu.memory_space<vmem>>, vector<32x96xf32>
    %cst_8 = arith.constant dense<0.000000e+00> : vector<8x96xf32>
    %9 = tpu.matmul %1, %8, %cst_8 {dimension_numbers = #tpu.dot_dimension_numbers<[1], [0], [0], [1], [0, 0, 1, 1], [], []>} : vector<8x32xf32>, vector<32x96xf32>, vector<8x96xf32> -> vector<8x96xf32>
    %c0_9 = arith.constant 0 : index
    %c0_10 = arith.constant 0 : index
    %10 = vector.load %arg4[%c0_9, %c0_10] : memref<1x96xf32, #tpu.memory_space<vmem>>, vector<1x96xf32>
    %11 = vector.broadcast %10 : vector<1x96xf32> to vector<8x96xf32>
    %12 = arith.addf %9, %11 : vector<8x96xf32>
    %13 = vector.extract_strided_slice %12 {offsets = [0, 0], sizes = [8, 8], strides = [1, 1]} : vector<8x96xf32> to vector<8x8xf32>
    %14 = vector.extract_strided_slice %12 {offsets = [0, 32], sizes = [8, 8], strides = [1, 1]} : vector<8x96xf32> to vector<8x8xf32>
    %15 = vector.extract_strided_slice %12 {offsets = [0, 64], sizes = [8, 8], strides = [1, 1]} : vector<8x96xf32> to vector<8x8xf32>
    %cst_11 = arith.constant dense<0.000000e+00> : vector<8x8xf32>
    %16 = tpu.matmul %13, %14, %cst_11 {dimension_numbers = #tpu.dot_dimension_numbers<[1], [1], [0], [0], [0, 0, 1, 0], [], []>} : vector<8x8xf32>, vector<8x8xf32>, vector<8x8xf32> -> vector<8x8xf32>
    %cst_12 = arith.constant 0.353553385 : f32
    %17 = vector.broadcast %cst_12 : f32 to vector<8x8xf32>
    %18 = arith.mulf %16, %17 : vector<8x8xf32>
    %19 = vector.broadcast %7 : vector<1x8xf32> to vector<8x8xf32>
    %20 = arith.addf %18, %19 : vector<8x8xf32>
    %cst_13 = arith.constant dense<0xFF800000> : vector<8xf32>
    %21 = vector.multi_reduction <maximumf>, %20, %cst_13 [1] : vector<8x8xf32> to vector<8xf32>
    %22 = vector.shape_cast %21 : vector<8xf32> to vector<8x1xf32>
    %23 = vector.broadcast %22 : vector<8x1xf32> to vector<8x8xf32>
    %24 = arith.subf %20, %23 : vector<8x8xf32>
    %25 = math.exp %24 : vector<8x8xf32>
    %cst_14 = arith.constant dense<0.000000e+00> : vector<8xf32>
    %26 = vector.multi_reduction <add>, %25, %cst_14 [1] : vector<8x8xf32> to vector<8xf32>
    %27 = vector.shape_cast %26 : vector<8xf32> to vector<8x1xf32>
    %28 = tpu.reciprocal %27 {approx = true} : vector<8x1xf32> -> vector<8x1xf32>
    %29 = vector.broadcast %28 : vector<8x1xf32> to vector<8x8xf32>
    %30 = arith.mulf %25, %29 : vector<8x8xf32>
    %cst_15 = arith.constant dense<0.000000e+00> : vector<8x8xf32>
    %31 = tpu.matmul %30, %15, %cst_15 {dimension_numbers = #tpu.dot_dimension_numbers<[1], [0], [0], [1], [0, 0, 1, 1], [], []>} : vector<8x8xf32>, vector<8x8xf32>, vector<8x8xf32> -> vector<8x8xf32>
    %32 = vector.extract_strided_slice %12 {offsets = [0, 8], sizes = [8, 8], strides = [1, 1]} : vector<8x96xf32> to vector<8x8xf32>
    %33 = vector.extract_strided_slice %12 {offsets = [0, 40], sizes = [8, 8], strides = [1, 1]} : vector<8x96xf32> to vector<8x8xf32>
    %34 = vector.extract_strided_slice %12 {offsets = [0, 72], sizes = [8, 8], strides = [1, 1]} : vector<8x96xf32> to vector<8x8xf32>
    %cst_16 = arith.constant dense<0.000000e+00> : vector<8x8xf32>
    %35 = tpu.matmul %32, %33, %cst_16 {dimension_numbers = #tpu.dot_dimension_numbers<[1], [1], [0], [0], [0, 0, 1, 0], [], []>} : vector<8x8xf32>, vector<8x8xf32>, vector<8x8xf32> -> vector<8x8xf32>
    %cst_17 = arith.constant 0.353553385 : f32
    %36 = vector.broadcast %cst_17 : f32 to vector<8x8xf32>
    %37 = arith.mulf %35, %36 : vector<8x8xf32>
    %38 = vector.broadcast %7 : vector<1x8xf32> to vector<8x8xf32>
    %39 = arith.addf %37, %38 : vector<8x8xf32>
    %cst_18 = arith.constant dense<0xFF800000> : vector<8xf32>
    %40 = vector.multi_reduction <maximumf>, %39, %cst_18 [1] : vector<8x8xf32> to vector<8xf32>
    %41 = vector.shape_cast %40 : vector<8xf32> to vector<8x1xf32>
    %42 = vector.broadcast %41 : vector<8x1xf32> to vector<8x8xf32>
    %43 = arith.subf %39, %42 : vector<8x8xf32>
    %44 = math.exp %43 : vector<8x8xf32>
    %cst_19 = arith.constant dense<0.000000e+00> : vector<8xf32>
    %45 = vector.multi_reduction <add>, %44, %cst_19 [1] : vector<8x8xf32> to vector<8xf32>
    %46 = vector.shape_cast %45 : vector<8xf32> to vector<8x1xf32>
    %47 = tpu.reciprocal %46 {approx = true} : vector<8x1xf32> -> vector<8x1xf32>
    %48 = vector.broadcast %47 : vector<8x1xf32> to vector<8x8xf32>
    %49 = arith.mulf %44, %48 : vector<8x8xf32>
    %cst_20 = arith.constant dense<0.000000e+00> : vector<8x8xf32>
    %50 = tpu.matmul %49, %34, %cst_20 {dimension_numbers = #tpu.dot_dimension_numbers<[1], [0], [0], [1], [0, 0, 1, 1], [], []>} : vector<8x8xf32>, vector<8x8xf32>, vector<8x8xf32> -> vector<8x8xf32>
    %51 = vector.extract_strided_slice %12 {offsets = [0, 16], sizes = [8, 8], strides = [1, 1]} : vector<8x96xf32> to vector<8x8xf32>
    %52 = vector.extract_strided_slice %12 {offsets = [0, 48], sizes = [8, 8], strides = [1, 1]} : vector<8x96xf32> to vector<8x8xf32>
    %53 = vector.extract_strided_slice %12 {offsets = [0, 80], sizes = [8, 8], strides = [1, 1]} : vector<8x96xf32> to vector<8x8xf32>
    %cst_21 = arith.constant dense<0.000000e+00> : vector<8x8xf32>
    %54 = tpu.matmul %51, %52, %cst_21 {dimension_numbers = #tpu.dot_dimension_numbers<[1], [1], [0], [0], [0, 0, 1, 0], [], []>} : vector<8x8xf32>, vector<8x8xf32>, vector<8x8xf32> -> vector<8x8xf32>
    %cst_22 = arith.constant 0.353553385 : f32
    %55 = vector.broadcast %cst_22 : f32 to vector<8x8xf32>
    %56 = arith.mulf %54, %55 : vector<8x8xf32>
    %57 = vector.broadcast %7 : vector<1x8xf32> to vector<8x8xf32>
    %58 = arith.addf %56, %57 : vector<8x8xf32>
    %cst_23 = arith.constant dense<0xFF800000> : vector<8xf32>
    %59 = vector.multi_reduction <maximumf>, %58, %cst_23 [1] : vector<8x8xf32> to vector<8xf32>
    %60 = vector.shape_cast %59 : vector<8xf32> to vector<8x1xf32>
    %61 = vector.broadcast %60 : vector<8x1xf32> to vector<8x8xf32>
    %62 = arith.subf %58, %61 : vector<8x8xf32>
    %63 = math.exp %62 : vector<8x8xf32>
    %cst_24 = arith.constant dense<0.000000e+00> : vector<8xf32>
    %64 = vector.multi_reduction <add>, %63, %cst_24 [1] : vector<8x8xf32> to vector<8xf32>
    %65 = vector.shape_cast %64 : vector<8xf32> to vector<8x1xf32>
    %66 = tpu.reciprocal %65 {approx = true} : vector<8x1xf32> -> vector<8x1xf32>
    %67 = vector.broadcast %66 : vector<8x1xf32> to vector<8x8xf32>
    %68 = arith.mulf %63, %67 : vector<8x8xf32>
    %cst_25 = arith.constant dense<0.000000e+00> : vector<8x8xf32>
    %69 = tpu.matmul %68, %53, %cst_25 {dimension_numbers = #tpu.dot_dimension_numbers<[1], [0], [0], [1], [0, 0, 1, 1], [], []>} : vector<8x8xf32>, vector<8x8xf32>, vector<8x8xf32> -> vector<8x8xf32>
    %70 = vector.extract_strided_slice %12 {offsets = [0, 24], sizes = [8, 8], strides = [1, 1]} : vector<8x96xf32> to vector<8x8xf32>
    %71 = vector.extract_strided_slice %12 {offsets = [0, 56], sizes = [8, 8], strides = [1, 1]} : vector<8x96xf32> to vector<8x8xf32>
    %72 = vector.extract_strided_slice %12 {offsets = [0, 88], sizes = [8, 8], strides = [1, 1]} : vector<8x96xf32> to vector<8x8xf32>
    %cst_26 = arith.constant dense<0.000000e+00> : vector<8x8xf32>
    %73 = tpu.matmul %70, %71, %cst_26 {dimension_numbers = #tpu.dot_dimension_numbers<[1], [1], [0], [0], [0, 0, 1, 0], [], []>} : vector<8x8xf32>, vector<8x8xf32>, vector<8x8xf32> -> vector<8x8xf32>
    %cst_27 = arith.constant 0.353553385 : f32
    %74 = vector.broadcast %cst_27 : f32 to vector<8x8xf32>
    %75 = arith.mulf %73, %74 : vector<8x8xf32>
    %76 = vector.broadcast %7 : vector<1x8xf32> to vector<8x8xf32>
    %77 = arith.addf %75, %76 : vector<8x8xf32>
    %cst_28 = arith.constant dense<0xFF800000> : vector<8xf32>
    %78 = vector.multi_reduction <maximumf>, %77, %cst_28 [1] : vector<8x8xf32> to vector<8xf32>
    %79 = vector.shape_cast %78 : vector<8xf32> to vector<8x1xf32>
    %80 = vector.broadcast %79 : vector<8x1xf32> to vector<8x8xf32>
    %81 = arith.subf %77, %80 : vector<8x8xf32>
    %82 = math.exp %81 : vector<8x8xf32>
    %cst_29 = arith.constant dense<0.000000e+00> : vector<8xf32>
    %83 = vector.multi_reduction <add>, %82, %cst_29 [1] : vector<8x8xf32> to vector<8xf32>
    %84 = vector.shape_cast %83 : vector<8xf32> to vector<8x1xf32>
    %85 = tpu.reciprocal %84 {approx = true} : vector<8x1xf32> -> vector<8x1xf32>
    %86 = vector.broadcast %85 : vector<8x1xf32> to vector<8x8xf32>
    %87 = arith.mulf %82, %86 : vector<8x8xf32>
    %cst_30 = arith.constant dense<0.000000e+00> : vector<8x8xf32>
    %88 = tpu.matmul %87, %72, %cst_30 {dimension_numbers = #tpu.dot_dimension_numbers<[1], [0], [0], [1], [0, 0, 1, 1], [], []>} : vector<8x8xf32>, vector<8x8xf32>, vector<8x8xf32> -> vector<8x8xf32>
    %89 = tpu.concatenate %31, %50, %69, %88 in 1 : vector<8x8xf32>, vector<8x8xf32>, vector<8x8xf32>, vector<8x8xf32> -> vector<8x32xf32>
    %c0_31 = arith.constant 0 : index
    %c0_32 = arith.constant 0 : index
    %90 = vector.load %arg5[%c0_31, %c0_32] : memref<32x32xf32, #tpu.memory_space<vmem>>, vector<32x32xf32>
    %cst_33 = arith.constant dense<0.000000e+00> : vector<8x32xf32>
    %91 = tpu.matmul %89, %90, %cst_33 {dimension_numbers = #tpu.dot_dimension_numbers<[1], [0], [0], [1], [0, 0, 1, 1], [], []>} : vector<8x32xf32>, vector<32x32xf32>, vector<8x32xf32> -> vector<8x32xf32>
    %c0_34 = arith.constant 0 : index
    %c0_35 = arith.constant 0 : index
    %92 = vector.load %arg6[%c0_34, %c0_35] : memref<1x32xf32, #tpu.memory_space<vmem>>, vector<1x32xf32>
    %93 = vector.broadcast %92 : vector<1x32xf32> to vector<8x32xf32>
    %94 = arith.addf %91, %93 : vector<8x32xf32>
    %95 = arith.addf %1, %94 : vector<8x32xf32>
    %c0_36 = arith.constant 0 : index
    %c0_37 = arith.constant 0 : index
    %96 = vector.load %arg7[%c0_36, %c0_37] : memref<1x32xf32, #tpu.memory_space<vmem>>, vector<1x32xf32>
    %c0_38 = arith.constant 0 : index
    %c0_39 = arith.constant 0 : index
    %97 = vector.load %arg8[%c0_38, %c0_39] : memref<1x32xf32, #tpu.memory_space<vmem>>, vector<1x32xf32>
    %cst_40 = arith.constant dense<0.000000e+00> : vector<8xf32>
    %98 = vector.multi_reduction <add>, %95, %cst_40 [1] : vector<8x32xf32> to vector<8xf32>
    %99 = vector.shape_cast %98 : vector<8xf32> to vector<8x1xf32>
    %cst_41 = arith.constant 3.200000e+01 : f32
    %100 = vector.broadcast %cst_41 : f32 to vector<8x1xf32>
    %101 = arith.divf %99, %100 : vector<8x1xf32>
    %102 = vector.broadcast %101 : vector<8x1xf32> to vector<8x32xf32>
    %103 = arith.subf %95, %102 : vector<8x32xf32>
    %104 = arith.mulf %103, %103 : vector<8x32xf32>
    %cst_42 = arith.constant dense<0.000000e+00> : vector<8xf32>
    %105 = vector.multi_reduction <add>, %104, %cst_42 [1] : vector<8x32xf32> to vector<8xf32>
    %106 = vector.shape_cast %105 : vector<8xf32> to vector<8x1xf32>
    %cst_43 = arith.constant 3.200000e+01 : f32
    %107 = vector.broadcast %cst_43 : f32 to vector<8x1xf32>
    %108 = arith.divf %106, %107 : vector<8x1xf32>
    %cst_44 = arith.constant 1.000000e-07 : f32
    %109 = vector.broadcast %cst_44 : f32 to vector<8x1xf32>
    %110 = arith.addf %108, %109 : vector<8x1xf32>
    %111 = math.rsqrt %110 : vector<8x1xf32>
    %112 = vector.broadcast %111 : vector<8x1xf32> to vector<8x32xf32>
    %113 = arith.mulf %103, %112 : vector<8x32xf32>
    %114 = vector.broadcast %96 : vector<1x32xf32> to vector<8x32xf32>
    %115 = arith.mulf %113, %114 : vector<8x32xf32>
    %116 = vector.broadcast %97 : vector<1x32xf32> to vector<8x32xf32>
    %117 = arith.addf %115, %116 : vector<8x32xf32>
    %c0_45 = arith.constant 0 : index
    %c0_46 = arith.constant 0 : index
    %118 = vector.load %arg9[%c0_45, %c0_46] : memref<32x64xf32, #tpu.memory_space<vmem>>, vector<32x64xf32>
    %cst_47 = arith.constant dense<0.000000e+00> : vector<8x64xf32>
    %119 = tpu.matmul %117, %118, %cst_47 {dimension_numbers = #tpu.dot_dimension_numbers<[1], [0], [0], [1], [0, 0, 1, 1], [], []>} : vector<8x32xf32>, vector<32x64xf32>, vector<8x64xf32> -> vector<8x64xf32>
    %c0_48 = arith.constant 0 : index
    %c0_49 = arith.constant 0 : index
    %120 = vector.load %arg10[%c0_48, %c0_49] : memref<1x64xf32, #tpu.memory_space<vmem>>, vector<1x64xf32>
    %121 = vector.broadcast %120 : vector<1x64xf32> to vector<8x64xf32>
    %122 = arith.addf %119, %121 : vector<8x64xf32>
    %cst_50 = arith.constant 5.000000e-01 : f32
    %123 = vector.broadcast %cst_50 : f32 to vector<8x64xf32>
    %124 = arith.mulf %123, %122 : vector<8x64xf32>
    %cst_51 = arith.constant 4.471500e-02 : f32
    %125 = vector.broadcast %cst_51 : f32 to vector<8x64xf32>
    %126 = arith.mulf %125, %122 : vector<8x64xf32>
    %127 = arith.mulf %126, %122 : vector<8x64xf32>
    %128 = arith.mulf %127, %122 : vector<8x64xf32>
    %129 = arith.addf %122, %128 : vector<8x64xf32>
    %cst_52 = arith.constant 0.797884583 : f32
    %130 = vector.broadcast %cst_52 : f32 to vector<8x64xf32>
    %131 = arith.mulf %130, %129 : vector<8x64xf32>
    %132 = math.tanh %131 : vector<8x64xf32>
    %cst_53 = arith.constant 1.000000e+00 : f32
    %133 = vector.broadcast %cst_53 : f32 to vector<8x64xf32>
    %134 = arith.addf %133, %132 : vector<8x64xf32>
    %135 = arith.mulf %124, %134 : vector<8x64xf32>
    %c0_54 = arith.constant 0 : index
    %c0_55 = arith.constant 0 : index
    %136 = vector.load %arg11[%c0_54, %c0_55] : memref<64x32xf32, #tpu.memory_space<vmem>>, vector<64x32xf32>
    %cst_56 = arith.constant dense<0.000000e+00> : vector<8x32xf32>
    %137 = tpu.matmul %135, %136, %cst_56 {dimension_numbers = #tpu.dot_dimension_numbers<[1], [0], [0], [1], [0, 0, 1, 1], [], []>} : vector<8x64xf32>, vector<64x32xf32>, vector<8x32xf32> -> vector<8x32xf32>
    %c0_57 = arith.constant 0 : index
    %c0_58 = arith.constant 0 : index
    %138 = vector.load %arg12[%c0_57, %c0_58] : memref<1x32xf32, #tpu.memory_space<vmem>>, vector<1x32xf32>
    %139 = vector.broadcast %138 : vector<1x32xf32> to vector<8x32xf32>
    %140 = arith.addf %137, %139 : vector<8x32xf32>
    %141 = arith.addf %117, %140 : vector<8x32xf32>
    %c0_59 = arith.constant 0 : index
    %c0_60 = arith.constant 0 : index
    %142 = vector.load %arg13[%c0_59, %c0_60] : memref<1x32xf32, #tpu.memory_space<vmem>>, vector<1x32xf32>
    %c0_61 = arith.constant 0 : index
    %c0_62 = arith.constant 0 : index
    %143 = vector.load %arg14[%c0_61, %c0_62] : memref<1x32xf32, #tpu.memory_space<vmem>>, vector<1x32xf32>
    %cst_63 = arith.constant dense<0.000000e+00> : vector<8xf32>
    %144 = vector.multi_reduction <add>, %141, %cst_63 [1] : vector<8x32xf32> to vector<8xf32>
    %145 = vector.shape_cast %144 : vector<8xf32> to vector<8x1xf32>
    %cst_64 = arith.constant 3.200000e+01 : f32
    %146 = vector.broadcast %cst_64 : f32 to vector<8x1xf32>
    %147 = arith.divf %145, %146 : vector<8x1xf32>
    %148 = vector.broadcast %147 : vector<8x1xf32> to vector<8x32xf32>
    %149 = arith.subf %141, %148 : vector<8x32xf32>
    %150 = arith.mulf %149, %149 : vector<8x32xf32>
    %cst_65 = arith.constant dense<0.000000e+00> : vector<8xf32>
    %151 = vector.multi_reduction <add>, %150, %cst_65 [1] : vector<8x32xf32> to vector<8xf32>
    %152 = vector.shape_cast %151 : vector<8xf32> to vector<8x1xf32>
    %cst_66 = arith.constant 3.200000e+01 : f32
    %153 = vector.broadcast %cst_66 : f32 to vector<8x1xf32>
    %154 = arith.divf %152, %153 : vector<8x1xf32>
    %cst_67 = arith.constant 1.000000e-07 : f32
    %155 = vector.broadcast %cst_67 : f32 to vector<8x1xf32>
    %156 = arith.addf %154, %155 : vector<8x1xf32>
    %157 = math.rsqrt %156 : vector<8x1xf32>
    %158 = vector.broadcast %157 : vector<8x1xf32> to vector<8x32xf32>
    %159 = arith.mulf %149, %158 : vector<8x32xf32>
    %160 = vector.broadcast %142 : vector<1x32xf32> to vector<8x32xf32>
    %161 = arith.mulf %159, %160 : vector<8x32xf32>
    %162 = vector.broadcast %143 : vector<1x32xf32> to vector<8x32xf32>
    %163 = arith.addf %161, %162 : vector<8x32xf32>
    %c0_68 = arith.constant 0 : index
    %c0_69 = arith.constant 0 : index
    %c0_70 = arith.constant 0 : index
    %164 = vector.load %arg15[%c0_68, %c0_69, %c0_70] : memref<1x8x32xf32, #tpu.memory_space<vmem>>, vector<1x8x32xf32>
    %165 = vector.shape_cast %164 : vector<1x8x32xf32> to vector<8x32xf32>
    %166 = vector.shape_cast %163 : vector<8x32xf32> to vector<1x8x32xf32>
    tpu.vector_store %arg15[%c0_68, %c0_69, %c0_70], %166 {strides = array<i32>} : memref<1x8x32xf32, #tpu.memory_space<vmem>>, vector<1x8x32xf32>,
    return
  }
  func.func @transform_0(%arg0: i32) -> (i32, i32, i32) {
    %c0_i32 = arith.constant 0 : i32
    %c0_i32_0 = arith.constant 0 : i32
    %c0_i32_1 = arith.constant 0 : i32
    return %arg0, %c0_i32, %c0_i32_0 : i32, i32, i32
  }
  func.func @transform_1(%arg0: i32) -> (i32, i32, i32) {
    %c0_i32 = arith.constant 0 : i32
    %c0_i32_0 = arith.constant 0 : i32
    %c0_i32_1 = arith.constant 0 : i32
    return %arg0, %c0_i32, %c0_i32_0 : i32, i32, i32
  }
  func.func @transform_2(%arg0: i32) -> (i32, i32) {
    %c0_i32 = arith.constant 0 : i32
    %c0_i32_0 = arith.constant 0 : i32
    %c0_i32_1 = arith.constant 0 : i32
    return %c0_i32, %c0_i32_0 : i32, i32
  }
  func.func @transform_3(%arg0: i32) -> (i32, i32) {
    %c0_i32 = arith.constant 0 : i32
    %c0_i32_0 = arith.constant 0 : i32
    %c0_i32_1 = arith.constant 0 : i32
    return %c0_i32, %c0_i32_0 : i32, i32
  }
  func.func @transform_4(%arg0: i32) -> (i32, i32) {
    %c0_i32 = arith.constant 0 : i32
    %c0_i32_0 = arith.constant 0 : i32
    %c0_i32_1 = arith.constant 0 : i32
    return %c0_i32, %c0_i32_0 : i32, i32
  }
  func.func @transform_5(%arg0: i32) -> (i32, i32) {
    %c0_i32 = arith.constant 0 : i32
    %c0_i32_0 = arith.constant 0 : i32
    %c0_i32_1 = arith.constant 0 : i32
    return %c0_i32, %c0_i32_0 : i32, i32
  }
  func.func @transform_6(%arg0: i32) -> (i32, i32) {
    %c0_i32 = arith.constant 0 : i32
    %c0_i32_0 = arith.constant 0 : i32
    %c0_i32_1 = arith.constant 0 : i32
    return %c0_i32, %c0_i32_0 : i32, i32
  }
  func.func @transform_7(%arg0: i32) -> (i32, i32) {
    %c0_i32 = arith.constant 0 : i32
    %c0_i32_0 = arith.constant 0 : i32
    %c0_i32_1 = arith.constant 0 : i32
    return %c0_i32, %c0_i32_0 : i32, i32
  }
  func.func @transform_8(%arg0: i32) -> (i32, i32) {
    %c0_i32 = arith.constant 0 : i32
    %c0_i32_0 = arith.constant 0 : i32
    %c0_i32_1 = arith.constant 0 : i32
    return %c0_i32, %c0_i32_0 : i32, i32
  }
  func.func @transform_9(%arg0: i32) -> (i32, i32) {
    %c0_i32 = arith.constant 0 : i32
    %c0_i32_0 = arith.constant 0 : i32
    %c0_i32_1 = arith.constant 0 : i32
    return %c0_i32, %c0_i32_0 : i32, i32
  }
  func.func @transform_10(%arg0: i32) -> (i32, i32) {
    %c0_i32 = arith.constant 0 : i32
    %c0_i32_0 = arith.constant 0 : i32
    %c0_i32_1 = arith.constant 0 : i32
    return %c0_i32, %c0_i32_0 : i32, i32
  }
  func.func @transform_11(%arg0: i32) -> (i32, i32) {
    %c0_i32 = arith.constant 0 : i32
    %c0_i32_0 = arith.constant 0 : i32
    %c0_i32_1 = arith.constant 0 : i32
    return %c0_i32, %c0_i32_0 : i32, i32
  }
  func.func @transform_12(%arg0: i32) -> (i32, i32) {
    %c0_i32 = arith.constant 0 : i32
    %c0_i32_0 = arith.constant 0 : i32
    %c0_i32_1 = arith.constant 0 : i32
    return %c0_i32, %c0_i32_0 : i32, i32
  }
  func.func @transform_13(%arg0: i32) -> (i32, i32) {
    %c0_i32 = arith.constant 0 : i32
    %c0_i32_0 = arith.constant 0 : i32
    %c0_i32_1 = arith.constant 0 : i32
    return %c0_i32, %c0_i32_0 : i32, i32
  }
  func.func @transform_14(%arg0: i32) -> (i32, i32, i32) {
    %c0_i32 = arith.constant 0 : i32
    %c0_i32_0 = arith.constant 0 : i32
    %c0_i32_1 = arith.constant 0 : i32
    return %arg0, %c0_i32, %c0_i32_0 : i32, i32, i32
  }
}

</mosaic_0001>

<llo_original>
// kernel: model_forward.4
$region0: #{model_forward.4}
  #allocation0 [shape = 'u32[]', space=smem, size = 0x4, offset = 0x4, fixed_abs, tag = 'smem constant byte address 0x4 - core index']
  #allocation1 [shape = 'u32[72,128]{1,0:T(1,128)}', space=vmem, size = 0x9000, scoped, tag = 'internal scratch']
  %s0 = inlined_call_operand.vmem [shape: f32[16,32], index: 0, kind: input, shape index: {}]
  %s1 = inlined_call_operand.vmem [shape: f32[1,32], index: 1, kind: input, shape index: {}]
  %s2 = inlined_call_operand.vmem [shape: f32[1,32], index: 2, kind: input, shape index: {}]
  %s3 = inlined_call_operand.vmem [shape: f32[16,32], index: 3, kind: output, shape index: {}]
  %s4 = sld [smem:[#allocation0]]
  $region22: #{model_forward.4} parent=0
    _
  %s6 = ssub.s32 1, %s4
  %s7 = scalar_select 0, %s6, %s4
  // Predicated region
  $region2: #{model_forward.4} parent=0 // pred_check
    _
  $region3: #{model_forward.4} parent=0 // pred_check_branch
    %9 = sbr.rel (0) target = $region5
  $region4: #{model_forward.4} parent=0 // pred_region
    _
  $region5: #{model_forward.4} parent=0 // pred_fallthru
    _
  // Predicated region
  $region6: #{model_forward.4} parent=0 // pred_check
    _
  $region7: #{model_forward.4} parent=0 // pred_check_branch
    %11 = sbr.rel (0) target = $region9
  $region8: #{model_forward.4} parent=0 // pred_region
    _
  $region9: #{model_forward.4} parent=0 // pred_fallthru
    _
  // Predicated region
  $region10: #{model_forward.4} parent=0 // pred_check
    _
  $region11: #{model_forward.4} parent=0 // pred_check_branch
    %13 = sbr.rel (0) target = $region13
  $region12: #{model_forward.4} parent=0 // pred_region
    _
  $region13: #{model_forward.4} parent=0 // pred_fallthru
    _
  %v14 = vld [vmem:[%s0] sm:$0xff]
  %v15 = vld [vmem:[%s0 + $0x8] sm:$0xff]
  %v16 = vld [vmem:[%s1] sm:$0x1]
  %v17 = vld [vmem:[%s2] sm:$0x1]
  %vm18 = vcmask 261120
  %v19 = vsel %vm18, %v14, 0.0
  %20 = vadd.xlane.f32.xlu0 %v19
  %v21 = vpop.xlane.xlu0 %20
  %v22 = vsel %vm18, %v15, 0.0
  %23 = vadd.xlane.f32.xlu0 %v22
  %v24 = vpop.xlane.xlu0 %23
  %v25 = vrcp.pop 32.0
  %v26 = vmul.f32 32.0, %v25
  %v27 = vsub.f32 1.0, %v26
  %v28 = vmul.f32 %v25, %v27
  %v29 = vadd.f32 %v25, %v28
  %vm30 = vweird.f32 %v25
  %v31 = vsel %vm30, %v25, %v29
  %v32 = vmul.f32 %v21, %v31
  %v33 = vmul.f32 %v24, %v31
  %v34 = vsub.f32 %v14, %v32
  %v35 = vsub.f32 %v15, %v33
  %v36 = vmul.f32 %v34, %v34
  %v37 = vmul.f32 %v35, %v35
  %v38 = vsel %vm18, %v36, 0.0
  %39 = vadd.xlane.f32.xlu0 %v38
  %v40 = vpop.xlane.xlu0 %39
  %v41 = vsel %vm18, %v37, 0.0
  %42 = vadd.xlane.f32.xlu0 %v41
  %v43 = vpop.xlane.xlu0 %42
  %v44 = vmul.f32 %v40, %v31
  %v45 = vmul.f32 %v43, %v31
  %v46 = vadd.f32 %v44, 1e-07
  %v47 = vadd.f32 %v45, 1e-07
  %v48 = vrsqrt.pop %v46
  %v49 = vmul.f32 %v48, %v46
  %v50 = vmul.f32 %v49, %v48
  %v51 = vmul.f32 0.5, %v50
  %v52 = vsub.f32 1.5, %v51
  %v53 = vmul.f32 %v48, %v52
  %vm54 = vweird.f32 %v46
  %vm55 = vweird.f32 %v48
  %vm56 = vmor %vm54, %vm55
  %v57 = vsel %vm56, %v48, %v53
  %v58 = vrsqrt.pop %v47
  %v59 = vmul.f32 %v58, %v47
  %v60 = vmul.f32 %v59, %v58
  %v61 = vmul.f32 0.5, %v60
  %v62 = vsub.f32 1.5, %v61
  %v63 = vmul.f32 %v58, %v62
  %vm64 = vweird.f32 %v47
  %vm65 = vweird.f32 %v58
  %vm66 = vmor %vm64, %vm65
  %v67 = vsel %vm66, %v58, %v63
  %v68 = vmul.f32 %v34, %v57
  %v69 = vmul.f32 %v35, %v67
  %v71 = vperm.slane %v16, 0
  %v73 = vmul.f32 %v68, %v71
  %v74 = vmul.f32 %v69, %v71
  %v76 = vperm.slane %v17, 0
  %v78 = vadd.f32 %v73, %v76
  %v79 = vadd.f32 %v74, %v76
  %80 = vst.msk [vmem:[%s3] sm:$0xff] %vm18, %v78
  %81 = vst.msk [vmem:[%s3 + $0x8] sm:$0xff] %vm18, %v79
  // Predicated region
  $region14: #{model_forward.4} parent=0 // pred_check
    _
  $region15: #{model_forward.4} parent=0 // pred_check_branch
    %83 = sbr.rel (0) target = $region17
  $region16: #{model_forward.4} parent=0 // pred_region
    _
  $region17: #{model_forward.4} parent=0 // pred_fallthru
    _
  // Predicated region
  $region18: #{model_forward.4} parent=0 // pred_check
    _
  $region19: #{model_forward.4} parent=0 // pred_check_branch
    %85 = sbr.rel (0) target = $region21
  $region20: #{model_forward.4} parent=0 // pred_region
    _
  $region21: #{model_forward.4} parent=0 // pred_fallthru
    _

// kernel: model_forward.7
$region0: #{model_forward.7}
  #allocation0 [shape = 'u32[]', space=smem, size = 0x4, offset = 0x4, fixed_abs, tag = 'smem constant byte address 0x4 - core index']
  #allocation1 [shape = 'u32[72,128]{1,0:T(1,128)}', space=vmem, size = 0x9000, scoped, tag = 'internal scratch']
  #allocation2 [shape = 'f32[1,1]{1,0:T(1,128)S(1)}', space=vmem, size = 0x200, scoped, tag = 'scoped memory for model_forward.7']
  %s0 = inlined_call_operand.vmem [shape: f32[2,32], index: 0, kind: input, shape index: {}]
  %s1 = inlined_call_operand.vmem [shape: f32[32,32], index: 1, kind: input, shape index: {}]
  %s2 = inlined_call_operand.vmem [shape: f32[1,32], index: 2, kind: input, shape index: {}]
  %s3 = inlined_call_operand.vmem [shape: f32[1,32], index: 3, kind: input, shape index: {}]
  %s4 = inlined_call_operand.<no memory space> [shape: f32[1,1], index: 4, kind: input, shape index: {}]
  %s5 = inlined_call_operand.vmem [shape: f32[2,1], index: 5, kind: input, shape index: {}]
  %s6 = inlined_call_operand.vmem [shape: f32[2,1], index: 6, kind: output, shape index: {0}]
  %s7 = inlined_call_operand.hbm [shape: f32[1,1], index: 7, kind: output, shape index: {1}]
  %8 = xla_tuple %s6, %s7
  %s9 = sld [smem:[#allocation0]]
  $region42: #{model_forward.7} parent=0
    _
  %s11 = ssub.s32 1, %s9
  %s12 = scalar_select 0, %s11, %s9
  %v13 = vstv %s4
  %14 = vst [vmem:[#allocation2] sm:$0x1] %v13
  $region1: #{model_forward.7} parent=0
    #allocation3 [shape = 'u8[512]{0}', space=vmem, size = 0x400, scoped, tag = 'output window, operand 1, single buffered']
    #allocation4 [shape = 's32[1]{0}', space=sflag, size = 0x4, scoped, tag = 'scoped memory for model_forward.7']
    %15 = vsyncpa [#allocation4], 0
    // Predicated region
    $region2: #{model_forward.7} parent=1 // pred_check
      _
    $region3: #{model_forward.7} parent=1 // pred_check_branch
      %17 = sbr.rel (0) target = $region5
    $region4: #{model_forward.7} parent=1 // pred_region
      _
    $region5: #{model_forward.7} parent=1 // pred_fallthru
      _
    // Predicated region
    $region6: #{model_forward.7} parent=1 // pred_check
      _
    $region7: #{model_forward.7} parent=1 // pred_check_branch
      %19 = sbr.rel (0) target = $region9
    $region8: #{model_forward.7} parent=1 // pred_region
      _
    $region9: #{model_forward.7} parent=1 // pred_fallthru
      _
    // Predicated region
    $region10: #{model_forward.7} parent=1 // pred_check
      _
    $region11: #{model_forward.7} parent=1 // pred_check_branch
      %21 = sbr.rel (0) target = $region13
    $region12: #{model_forward.7} parent=1 // pred_region
      _
    $region13: #{model_forward.7} parent=1 // pred_fallthru
      _
    // Predicated region
    $region14: #{model_forward.7} parent=1 // pred_check
      _
    $region15: #{model_forward.7} parent=1 // pred_check_branch
      %23 = sbr.rel (0) target = $region17
    $region16: #{model_forward.7} parent=1 // pred_region
      _
    $region17: #{model_forward.7} parent=1 // pred_fallthru
      _
    // Predicated region
    $region18: #{model_forward.7} parent=1 // pred_check
      _
    $region19: #{model_forward.7} parent=1 // pred_check_branch
      %25 = sbr.rel (0) target = $region21
    $region20: #{model_forward.7} parent=1 // pred_region
      _
    $region21: #{model_forward.7} parent=1 // pred_fallthru
      _
    // Predicated region
    $region22: #{model_forward.7} parent=1 // pred_check
      _
    $region23: #{model_forward.7} parent=1 // pred_check_branch
      %27 = sbr.rel (0) target = $region25
    $region24: #{model_forward.7} parent=1 // pred_region
      _
    $region25: #{model_forward.7} parent=1 // pred_fallthru
      _
    %v28 = vld [vmem:[%s0] sm:$0x3]
    %v29 = vld [vmem:[%s1] sm:$0xff]
    %v30 = vld [vmem:[%s1 + $0x8] sm:$0xff]
    %v31 = vld [vmem:[%s1 + $0x10] sm:$0xff]
    %v32 = vld [vmem:[%s1 + $0x18] sm:$0xff]
    %v33 = vld [vmem:[%s2] sm:$0x1]
    %v35 = vperm.slane %v33, 0
    %vm37 = vcmask 261120
    %v39 = vsel %vm37, %v28, 0
    %41 = vmatpush.msra.mxu0 0.0
    %42 = vmatpush.msra.mxu0 0.0
    %43 = vmatpush.msra.mxu0 0.0
    %44 = vmatpush.msra.mxu0 0.0
    %45 = vmatpush.msra.mxu0 0.0
    %46 = vmatpush.msra.mxu0 0.0
    %47 = vmatpush.msra.mxu0 0.0
    %48 = vmatpush.msra.mxu0 0.0
    %49 = vmatpush.msra.mxu0 0.0
    %50 = vmatpush.msra.mxu0 0.0
    %51 = vmatpush.msra.mxu0 0.0
    %52 = vmatpush.msra.mxu0 0.0
    %53 = vmatpush.msra.mxu0 %v32
    %54 = vmatpush.msra.mxu0 %v31
    %55 = vmatpush.msra.mxu0 %v30
    %56 = vmatpush.msra.mxu0 %v29
    %57 = vmatmul.f32.gmra.mxu0 %v39
    %v58 = vpop.f32.mrf.mxu0
    %v59 = vadd.f32 %v35, %v58
    %60 = vdwg.mxu0
    %v61 = vtanh.pop %v59
    %v62 = vld [vmem:[%s3] sm:$0x1]
    %v64 = vperm.slane %v62, 0
    %v66 = vmul.f32 %v61, %v64
    %vm67 = vcmask 254976
    %v68 = vsel %vm67, %v66, 0.0
    %69 = vadd.xlane.f32.xlu0 %v68
    %v70 = vpop.xlane.xlu0 %69
    %v71 = vld [vmem:[#allocation2] sm:$0x1]
    %v73 = vperm.slane %v71, 0
    %v75 = vadd.f32 %v70, %v73
    %vm76 = vcmask 1024
    %77 = vst.msk [vmem:[%s6] sm:$0x3] %vm76, %v75
    %v78 = vld [vmem:[%s5] sm:$0x3]
    %v79 = vsub.f32 %v75, %v78
    %v80 = vmul.f32 %v79, %v79
    %v81 = vsel %vm76, %v80, 0.0
    %v82 = vrot.slane %v81, 4
    %v83 = vadd.f32 %v81, %v82
    %v84 = vrot.slane %v83, 2
    %v85 = vadd.f32 %v83, %v84
    %v86 = vrot.slane %v85, 1
    %v87 = vadd.f32 %v85, %v86
    %v88 = vmul.f32 %v87, 0.5
    %vm89 = vcmask 0
    %90 = vst.msk [vmem:[#allocation3] sm:$0x1] %vm89, %v88
    // Predicated region
    $region26: #{model_forward.7} parent=1 // pred_check
      _
    $region27: #{model_forward.7} parent=1 // pred_check_branch
      %92 = sbr.rel (0) target = $region29
    $region28: #{model_forward.7} parent=1 // pred_region
      _
    $region29: #{model_forward.7} parent=1 // pred_fallthru
      _
    // Predicated region
    $region30: #{model_forward.7} parent=1 // pred_check
      _
    $region31: #{model_forward.7} parent=1 // pred_check_branch
      %94 = sbr.rel (0) target = $region33
    $region32: #{model_forward.7} parent=1 // pred_region
      %96 = vsyncadd [#allocation4], 0
      %s98 = sshll.u32 [#allocation3], 4
      %s99 = int_to_ptr.vmem [resolvable:$true] %s98
      %s100 = sshll.u32 %s7, 4
      %s101 = int_to_ptr.hbm [resolvable:$true] %s100
      %103 = dma.vmem_to_hbm [thread:$0]  %s99, 16, %s101, [#allocation4]
    $region33: #{model_forward.7} parent=1 // pred_fallthru
      _
    // Predicated region
    $region34: #{model_forward.7} parent=1 // pred_check
      _
    $region35: #{model_forward.7} parent=1 // pred_check_branch
      %105 = sbr.rel (0) target = $region37
    $region36: #{model_forward.7} parent=1 // pred_region
      _
    $region37: #{model_forward.7} parent=1 // pred_fallthru
      _
    // Predicated region
    $region38: #{model_forward.7} parent=1 // pred_check
      _
    $region39: #{model_forward.7} parent=1 // pred_check_branch
      %107 = sbr.rel (0) target = $region41
    $region40: #{model_forward.7} parent=1 // pred_region
      %109 = dma.done [#allocation4], 16
    $region41: #{model_forward.7} parent=1 // pred_fallthru
      _
    %110 = vsyncpa [#allocation4], 1

// kernel: model_forward.5
$region0: #{model_forward.5}
  #allocation0 [shape = 'u32[]', space=smem, size = 0x4, offset = 0x4, fixed_abs, tag = 'smem constant byte address 0x4 - core index']
  #allocation1 [shape = 'u32[72,128]{1,0:T(1,128)}', space=vmem, size = 0x9000, scoped, tag = 'internal scratch']
  %s0 = inlined_call_operand.vmem [shape: f32[2,8,32], index: 0, kind: input, shape index: {}]
  %s1 = inlined_call_operand.vmem [shape: f32[2,1,8], index: 1, kind: input, shape index: {}]
  %s2 = inlined_call_operand.vmem [shape: f32[32,96], index: 2, kind: input, shape index: {}]
  %s3 = inlined_call_operand.vmem [shape: f32[1,96], index: 3, kind: input, shape index: {}]
  %s4 = inlined_call_operand.vmem [shape: f32[32,32], index: 4, kind: input, shape index: {}]
  %s5 = inlined_call_operand.vmem [shape: f32[1,32], index: 5, kind: input, shape index: {}]
  %s6 = inlined_call_operand.vmem [shape: f32[1,32], index: 6, kind: input, shape index: {}]
  %s7 = inlined_call_operand.vmem [shape: f32[1,32], index: 7, kind: input, shape index: {}]
  %s8 = inlined_call_operand.vmem [shape: f32[32,64], index: 8, kind: input, shape index: {}]
  %s9 = inlined_call_operand.vmem [shape: f32[1,64], index: 9, kind: input, shape index: {}]
  %s10 = inlined_call_operand.vmem [shape: f32[64,32], index: 10, kind: input, shape index: {}]
  %s11 = inlined_call_operand.vmem [shape: f32[1,32], index: 11, kind: input, shape index: {}]
  %s12 = inlined_call_operand.vmem [shape: f32[1,32], index: 12, kind: input, shape index: {}]
  %s13 = inlined_call_operand.vmem [shape: f32[1,32], index: 13, kind: input, shape index: {}]
  %s14 = inlined_call_operand.vmem [shape: f32[2,8,32], index: 14, kind: output, shape index: {}]
  %s15 = sld [smem:[#allocation0]]
  $region89: #{model_forward.5} parent=0
    _
  %s17 = ssub.s32 1, %s15
  %s18 = scalar_select 0, %s17, %s15
  loop: start=0, step=1, limit=4
  $region2: #{model_forward.5} parent=0 // loop_pre_header
    _
  $region3: #{model_forward.5} parent=0 // loop_header
    %s20 = sphi 0, %s24
    %p21 = scmp.ge.s32.totalorder %s20, 4
    %s30 = sphi 0, %s32
    %s33 = sphi 0, %s30
    %s34 = sphi 0, %s33
    %s50 = sphi 0, %s34
    %s56 = sphi 0, %s58
    %s59 = sphi 0, %s56
    %s60 = sphi 0, %s59
    %s76 = sphi 0, %s60
    %s80 = sphi 0, %s80
    %s82 = sphi 0, %s80
    %s83 = sphi 0, %s82
    %s97 = sphi 0, %s83
    %s101 = sphi 0, %s101
    %s103 = sphi 0, %s101
    %s104 = sphi 0, %s103
    %s118 = sphi 0, %s104
    %s122 = sphi 0, %s122
    %s124 = sphi 0, %s122
    %s125 = sphi 0, %s124
    %s139 = sphi 0, %s125
    %s143 = sphi 0, %s143
    %s145 = sphi 0, %s143
    %s146 = sphi 0, %s145
    %s160 = sphi 0, %s146
    %s164 = sphi 0, %s164
    %s166 = sphi 0, %s164
    %s167 = sphi 0, %s166
    %s181 = sphi 0, %s167
    %s185 = sphi 0, %s185
    %s187 = sphi 0, %s185
    %s188 = sphi 0, %s187
    %s202 = sphi 0, %s188
    %s206 = sphi 0, %s206
    %s208 = sphi 0, %s206
    %s209 = sphi 0, %s208
    %s223 = sphi 0, %s209
    %s227 = sphi 0, %s227
    %s229 = sphi 0, %s227
    %s230 = sphi 0, %s229
    %s244 = sphi 0, %s230
    %s248 = sphi 0, %s248
    %s250 = sphi 0, %s248
    %s251 = sphi 0, %s250
    %s265 = sphi 0, %s251
    %s269 = sphi 0, %s269
    %s271 = sphi 0, %s269
    %s272 = sphi 0, %s271
    %s286 = sphi 0, %s272
    %s290 = sphi 0, %s290
    %s292 = sphi 0, %s290
    %s293 = sphi 0, %s292
    %s307 = sphi 0, %s293
    %s311 = sphi 0, %s311
    %s313 = sphi 0, %s311
    %s314 = sphi 0, %s313
    %s328 = sphi 0, %s314
    %s334 = sphi 0, %s336
    %s337 = sphi 0, %s334
    %s338 = sphi 0, %s337
    %s354 = sphi 0, %s338
  $region4: #{model_forward.5} parent=0 // loop_header_branch
    %23 = sbr.rel (%p21) target = $region8
  $region5: #{model_forward.5} parent=0 // loop_body
    %s25 = ssub.s32 %s20, 1
    %s26 = ssub.s32 %s20, 2
    %s27 = sadd.s32 %s20, 1
    %s28 = ssub.s32 %s20, %s27
    %p29 = scmp.eq.s32.totalorder %s28, 0
    %s31 = sadd.s32 %s30, 1
    %s32 = scalar_select %p29, %s30, %s31
    %p35 = pneg %p29
    %p36 = scmp.eq.s32.totalorder %s20, 1
    %p37 = por %p35, %p36
    %p38 = scmp.ne.s32.totalorder %s30, %s33
    %p39 = scmp.eq.s32.totalorder %s20, 0
    %p40 = por %p38, %p39
    %p41 = scmp.ne.s32.totalorder %s30, %s33
    %p42 = scmp.eq.s32.totalorder %s25, 1
    %p43 = por %p41, %p42
    %p44 = scmp.ne.s32.totalorder %s33, %s34
    %p45 = scmp.eq.s32.totalorder %s25, 0
    %p46 = por %p44, %p45
    %p47 = scmp.ne.s32.totalorder %s33, %s34
    %p48 = scmp.eq.s32.totalorder %s26, 1
    %p49 = por %p47, %p48
    %p51 = scmp.ne.s32.totalorder %s34, %s50
    %p52 = scmp.eq.s32.totalorder %s26, 0
    %p53 = por %p51, %p52
    %s54 = ssub.s32 %s20, %s27
    %p55 = scmp.eq.s32.totalorder %s54, 0
    %s57 = sadd.s32 %s56, 1
    %s58 = scalar_select %p55, %s56, %s57
    %p61 = pneg %p55
    %p62 = scmp.eq.s32.totalorder %s20, 1
    %p63 = por %p61, %p62
    %p64 = scmp.ne.s32.totalorder %s56, %s59
    %p65 = scmp.eq.s32.totalorder %s20, 0
    %p66 = por %p64, %p65
    %p67 = scmp.ne.s32.totalorder %s56, %s59
    %p68 = scmp.eq.s32.totalorder %s25, 1
    %p69 = por %p67, %p68
    %p70 = scmp.ne.s32.totalorder %s59, %s60
    %p71 = scmp.eq.s32.totalorder %s25, 0
    %p72 = por %p70, %p71
    %p73 = scmp.ne.s32.totalorder %s59, %s60
    %p74 = scmp.eq.s32.totalorder %s26, 1
    %p75 = por %p73, %p74
    %p77 = scmp.ne.s32.totalorder %s60, %s76
    %p78 = scmp.eq.s32.totalorder %s26, 0
    %p79 = por %p77, %p78
    %s81 = sadd.s32 %s80, 1
    %p84 = scmp.eq.s32.totalorder %s20, 1
    %p85 = scmp.ne.s32.totalorder %s80, %s82
    %p86 = scmp.eq.s32.totalorder %s20, 0
    %p87 = por %p85, %p86
    %p88 = scmp.ne.s32.totalorder %s80, %s82
    %p89 = scmp.eq.s32.totalorder %s25, 1
    %p90 = por %p88, %p89
    %p91 = scmp.ne.s32.totalorder %s82, %s83
    %p92 = scmp.eq.s32.totalorder %s25, 0
    %p93 = por %p91, %p92
    %p94 = scmp.ne.s32.totalorder %s82, %s83
    %p95 = scmp.eq.s32.totalorder %s26, 1
    %p96 = por %p94, %p95
    %p98 = scmp.ne.s32.totalorder %s83, %s97
    %p99 = scmp.eq.s32.totalorder %s26, 0
    %p100 = por %p98, %p99
    %s102 = sadd.s32 %s101, 1
    %p105 = scmp.eq.s32.totalorder %s20, 1
    %p106 = scmp.ne.s32.totalorder %s101, %s103
    %p107 = scmp.eq.s32.totalorder %s20, 0
    %p108 = por %p106, %p107
    %p109 = scmp.ne.s32.totalorder %s101, %s103
    %p110 = scmp.eq.s32.totalorder %s25, 1
    %p111 = por %p109, %p110
    %p112 = scmp.ne.s32.totalorder %s103, %s104
    %p113 = scmp.eq.s32.totalorder %s25, 0
    %p114 = por %p112, %p113
    %p115 = scmp.ne.s32.totalorder %s103, %s104
    %p116 = scmp.eq.s32.totalorder %s26, 1
    %p117 = por %p115, %p116
    %p119 = scmp.ne.s32.totalorder %s104, %s118
    %p120 = scmp.eq.s32.totalorder %s26, 0
    %p121 = por %p119, %p120
    %s123 = sadd.s32 %s122, 1
    %p126 = scmp.eq.s32.totalorder %s20, 1
    %p127 = scmp.ne.s32.totalorder %s122, %s124
    %p128 = scmp.eq.s32.totalorder %s20, 0
    %p129 = por %p127, %p128
    %p130 = scmp.ne.s32.totalorder %s122, %s124
    %p131 = scmp.eq.s32.totalorder %s25, 1
    %p132 = por %p130, %p131
    %p133 = scmp.ne.s32.totalorder %s124, %s125
    %p134 = scmp.eq.s32.totalorder %s25, 0
    %p135 = por %p133, %p134
    %p136 = scmp.ne.s32.totalorder %s124, %s125
    %p137 = scmp.eq.s32.totalorder %s26, 1
    %p138 = por %p136, %p137
    %p140 = scmp.ne.s32.totalorder %s125, %s139
    %p141 = scmp.eq.s32.totalorder %s26, 0
    %p142 = por %p140, %p141
    %s144 = sadd.s32 %s143, 1
    %p147 = scmp.eq.s32.totalorder %s20, 1
    %p148 = scmp.ne.s32.totalorder %s143, %s145
    %p149 = scmp.eq.s32.totalorder %s20, 0
    %p150 = por %p148, %p149
    %p151 = scmp.ne.s32.totalorder %s143, %s145
    %p152 = scmp.eq.s32.totalorder %s25, 1
    %p153 = por %p151, %p152
    %p154 = scmp.ne.s32.totalorder %s145, %s146
    %p155 = scmp.eq.s32.totalorder %s25, 0
    %p156 = por %p154, %p155
    %p157 = scmp.ne.s32.totalorder %s145, %s146
    %p158 = scmp.eq.s32.totalorder %s26, 1
    %p159 = por %p157, %p158
    %p161 = scmp.ne.s32.totalorder %s146, %s160
    %p162 = scmp.eq.s32.totalorder %s26, 0
    %p163 = por %p161, %p162
    %s165 = sadd.s32 %s164, 1
    %p168 = scmp.eq.s32.totalorder %s20, 1
    %p169 = scmp.ne.s32.totalorder %s164, %s166
    %p170 = scmp.eq.s32.totalorder %s20, 0
    %p171 = por %p169, %p170
    %p172 = scmp.ne.s32.totalorder %s164, %s166
    %p173 = scmp.eq.s32.totalorder %s25, 1
    %p174 = por %p172, %p173
    %p175 = scmp.ne.s32.totalorder %s166, %s167
    %p176 = scmp.eq.s32.totalorder %s25, 0
    %p177 = por %p175, %p176
    %p178 = scmp.ne.s32.totalorder %s166, %s167
    %p179 = scmp.eq.s32.totalorder %s26, 1
    %p180 = por %p178, %p179
    %p182 = scmp.ne.s32.totalorder %s167, %s181
    %p183 = scmp.eq.s32.totalorder %s26, 0
    %p184 = por %p182, %p183
    %s186 = sadd.s32 %s185, 1
    %p189 = scmp.eq.s32.totalorder %s20, 1
    %p190 = scmp.ne.s32.totalorder %s185, %s187
    %p191 = scmp.eq.s32.totalorder %s20, 0
    %p192 = por %p190, %p191
    %p193 = scmp.ne.s32.totalorder %s185, %s187
    %p194 = scmp.eq.s32.totalorder %s25, 1
    %p195 = por %p193, %p194
    %p196 = scmp.ne.s32.totalorder %s187, %s188
    %p197 = scmp.eq.s32.totalorder %s25, 0
    %p198 = por %p196, %p197
    %p199 = scmp.ne.s32.totalorder %s187, %s188
    %p200 = scmp.eq.s32.totalorder %s26, 1
    %p201 = por %p199, %p200
    %p203 = scmp.ne.s32.totalorder %s188, %s202
    %p204 = scmp.eq.s32.totalorder %s26, 0
    %p205 = por %p203, %p204
    %s207 = sadd.s32 %s206, 1
    %p210 = scmp.eq.s32.totalorder %s20, 1
    %p211 = scmp.ne.s32.totalorder %s206, %s208
    %p212 = scmp.eq.s32.totalorder %s20, 0
    %p213 = por %p211, %p212
    %p214 = scmp.ne.s32.totalorder %s206, %s208
    %p215 = scmp.eq.s32.totalorder %s25, 1
    %p216 = por %p214, %p215
    %p217 = scmp.ne.s32.totalorder %s208, %s209
    %p218 = scmp.eq.s32.totalorder %s25, 0
    %p219 = por %p217, %p218
    %p220 = scmp.ne.s32.totalorder %s208, %s209
    %p221 = scmp.eq.s32.totalorder %s26, 1
    %p222 = por %p220, %p221
    %p224 = scmp.ne.s32.totalorder %s209, %s223
    %p225 = scmp.eq.s32.totalorder %s26, 0
    %p226 = por %p224, %p225
    %s228 = sadd.s32 %s227, 1
    %p231 = scmp.eq.s32.totalorder %s20, 1
    %p232 = scmp.ne.s32.totalorder %s227, %s229
    %p233 = scmp.eq.s32.totalorder %s20, 0
    %p234 = por %p232, %p233
    %p235 = scmp.ne.s32.totalorder %s227, %s229
    %p236 = scmp.eq.s32.totalorder %s25, 1
    %p237 = por %p235, %p236
    %p238 = scmp.ne.s32.totalorder %s229, %s230
    %p239 = scmp.eq.s32.totalorder %s25, 0
    %p240 = por %p238, %p239
    %p241 = scmp.ne.s32.totalorder %s229, %s230
    %p242 = scmp.eq.s32.totalorder %s26, 1
    %p243 = por %p241, %p242
    %p245 = scmp.ne.s32.totalorder %s230, %s244
    %p246 = scmp.eq.s32.totalorder %s26, 0
    %p247 = por %p245, %p246
    %s249 = sadd.s32 %s248, 1
    %p252 = scmp.eq.s32.totalorder %s20, 1
    %p253 = scmp.ne.s32.totalorder %s248, %s250
    %p254 = scmp.eq.s32.totalorder %s20, 0
    %p255 = por %p253, %p254
    %p256 = scmp.ne.s32.totalorder %s248, %s250
    %p257 = scmp.eq.s32.totalorder %s25, 1
    %p258 = por %p256, %p257
    %p259 = scmp.ne.s32.totalorder %s250, %s251
    %p260 = scmp.eq.s32.totalorder %s25, 0
    %p261 = por %p259, %p260
    %p262 = scmp.ne.s32.totalorder %s250, %s251
    %p263 = scmp.eq.s32.totalorder %s26, 1
    %p264 = por %p262, %p263
    %p266 = scmp.ne.s32.totalorder %s251, %s265
    %p267 = scmp.eq.s32.totalorder %s26, 0
    %p268 = por %p266, %p267
    %s270 = sadd.s32 %s269, 1
    %p273 = scmp.eq.s32.totalorder %s20, 1
    %p274 = scmp.ne.s32.totalorder %s269, %s271
    %p275 = scmp.eq.s32.totalorder %s20, 0
    %p276 = por %p274, %p275
    %p277 = scmp.ne.s32.totalorder %s269, %s271
    %p278 = scmp.eq.s32.totalorder %s25, 1
    %p279 = por %p277, %p278
    %p280 = scmp.ne.s32.totalorder %s271, %s272
    %p281 = scmp.eq.s32.totalorder %s25, 0
    %p282 = por %p280, %p281
    %p283 = scmp.ne.s32.totalorder %s271, %s272
    %p284 = scmp.eq.s32.totalorder %s26, 1
    %p285 = por %p283, %p284
    %p287 = scmp.ne.s32.totalorder %s272, %s286
    %p288 = scmp.eq.s32.totalorder %s26, 0
    %p289 = por %p287, %p288
    %s291 = sadd.s32 %s290, 1
    %p294 = scmp.eq.s32.totalorder %s20, 1
    %p295 = scmp.ne.s32.totalorder %s290, %s292
    %p296 = scmp.eq.s32.totalorder %s20, 0
    %p297 = por %p295, %p296
    %p298 = scmp.ne.s32.totalorder %s290, %s292
    %p299 = scmp.eq.s32.totalorder %s25, 1
    %p300 = por %p298, %p299
    %p301 = scmp.ne.s32.totalorder %s292, %s293
    %p302 = scmp.eq.s32.totalorder %s25, 0
    %p303 = por %p301, %p302
    %p304 = scmp.ne.s32.totalorder %s292, %s293
    %p305 = scmp.eq.s32.totalorder %s26, 1
    %p306 = por %p304, %p305
    %p308 = scmp.ne.s32.totalorder %s293, %s307
    %p309 = scmp.eq.s32.totalorder %s26, 0
    %p310 = por %p308, %p309
    %s312 = sadd.s32 %s311, 1
    %p315 = scmp.eq.s32.totalorder %s20, 1
    %p316 = scmp.ne.s32.totalorder %s311, %s313
    %p317 = scmp.eq.s32.totalorder %s20, 0
    %p318 = por %p316, %p317
    %p319 = scmp.ne.s32.totalorder %s311, %s313
    %p320 = scmp.eq.s32.totalorder %s25, 1
    %p321 = por %p319, %p320
    %p322 = scmp.ne.s32.totalorder %s313, %s314
    %p323 = scmp.eq.s32.totalorder %s25, 0
    %p324 = por %p322, %p323
    %p325 = scmp.ne.s32.totalorder %s313, %s314
    %p326 = scmp.eq.s32.totalorder %s26, 1
    %p327 = por %p325, %p326
    %p329 = scmp.ne.s32.totalorder %s314, %s328
    %p330 = scmp.eq.s32.totalorder %s26, 0
    %p331 = por %p329, %p330
    %s332 = ssub.s32 %s20, %s27
    %p333 = scmp.eq.s32.totalorder %s332, 0
    %s335 = sadd.s32 %s334, 1
    %s336 = scalar_select %p333, %s334, %s335
    %p339 = pneg %p333
    %p340 = scmp.eq.s32.totalorder %s20, 1
    %p341 = por %p339, %p340
    %p342 = scmp.ne.s32.totalorder %s334, %s337
    %p343 = scmp.eq.s32.totalorder %s20, 0
    %p344 = por %p342, %p343
    %p345 = scmp.ne.s32.totalorder %s334, %s337
    %p346 = scmp.eq.s32.totalorder %s25, 1
    %p347 = por %p345, %p346
    %p348 = scmp.ne.s32.totalorder %s337, %s338
    %p349 = scmp.eq.s32.totalorder %s25, 0
    %p350 = por %p348, %p349
    %p351 = scmp.ne.s32.totalorder %s337, %s338
    %p352 = scmp.eq.s32.totalorder %s26, 1
    %p353 = por %p351, %p352
    %p355 = scmp.ne.s32.totalorder %s338, %s354
    %p356 = scmp.eq.s32.totalorder %s26, 0
    %p357 = por %p355, %p356
    %p358 = scmp.le.s32.totalorder 1, %s20
    %p359 = scmp.lt.s32.totalorder %s20, 3
    %p360 = pnand %p358, %p359
    %p361 = pneg %p360
    // Predicated region
    $region9: #{model_forward.5} parent=5 // pred_check
      _
    $region10: #{model_forward.5} parent=5 // pred_check_branch
      %363 = sbr.rel (%p360) target = $region12
    $region11: #{model_forward.5} parent=5 // pred_region
      %s364 = ssub.s32 %s20, 1
      // Predicated region
      $region13: #{model_forward.5} parent=11 // pred_check
        %p365 = pneg %p93
      $region14: #{model_forward.5} parent=11 // pred_check_branch
        %367 = sbr.rel (%p365) target = $region16
      $region15: #{model_forward.5} parent=11 // pred_region
        _
      $region16: #{model_forward.5} parent=11 // pred_fallthru
        _
      // Predicated region
      $region17: #{model_forward.5} parent=11 // pred_check
        %p368 = pneg %p114
      $region18: #{model_forward.5} parent=11 // pred_check_branch
        %370 = sbr.rel (%p368) target = $region20
      $region19: #{model_forward.5} parent=11 // pred_region
        _
      $region20: #{model_forward.5} parent=11 // pred_fallthru
        _
      // Predicated region
      $region21: #{model_forward.5} parent=11 // pred_check
        %p371 = pneg %p135
      $region22: #{model_forward.5} parent=11 // pred_check_branch
        %373 = sbr.rel (%p371) target = $region24
      $region23: #{model_forward.5} parent=11 // pred_region
        _
      $region24: #{model_forward.5} parent=11 // pred_fallthru
        _
      // Predicated region
      $region25: #{model_forward.5} parent=11 // pred_check
        %p374 = pneg %p156
      $region26: #{model_forward.5} parent=11 // pred_check_branch
        %376 = sbr.rel (%p374) target = $region28
      $region27: #{model_forward.5} parent=11 // pred_region
        _
      $region28: #{model_forward.5} parent=11 // pred_fallthru
        _
      // Predicated region
      $region29: #{model_forward.5} parent=11 // pred_check
        %p377 = pneg %p177
      $region30: #{model_forward.5} parent=11 // pred_check_branch
        %379 = sbr.rel (%p377) target = $region32
      $region31: #{model_forward.5} parent=11 // pred_region
        _
      $region32: #{model_forward.5} parent=11 // pred_fallthru
        _
      // Predicated region
      $region33: #{model_forward.5} parent=11 // pred_check
        %p380 = pneg %p198
      $region34: #{model_forward.5} parent=11 // pred_check_branch
        %382 = sbr.rel (%p380) target = $region36
      $region35: #{model_forward.5} parent=11 // pred_region
        _
      $region36: #{model_forward.5} parent=11 // pred_fallthru
        _
      // Predicated region
      $region37: #{model_forward.5} parent=11 // pred_check
        %p383 = pneg %p219
      $region38: #{model_forward.5} parent=11 // pred_check_branch
        %385 = sbr.rel (%p383) target = $region40
      $region39: #{model_forward.5} parent=11 // pred_region
        _
      $region40: #{model_forward.5} parent=11 // pred_fallthru
        _
      // Predicated region
      $region41: #{model_forward.5} parent=11 // pred_check
        %p386 = pneg %p240
      $region42: #{model_forward.5} parent=11 // pred_check_branch
        %388 = sbr.rel (%p386) target = $region44
      $region43: #{model_forward.5} parent=11 // pred_region
        _
      $region44: #{model_forward.5} parent=11 // pred_fallthru
        _
      // Predicated region
      $region45: #{model_forward.5} parent=11 // pred_check
        %p389 = pneg %p261
      $region46: #{model_forward.5} parent=11 // pred_check_branch
        %391 = sbr.rel (%p389) target = $region48
      $region47: #{model_forward.5} parent=11 // pred_region
        _
      $region48: #{model_forward.5} parent=11 // pred_fallthru
        _
      // Predicated region
      $region49: #{model_forward.5} parent=11 // pred_check
        %p392 = pneg %p282
      $region50: #{model_forward.5} parent=11 // pred_check_branch
        %394 = sbr.rel (%p392) target = $region52
      $region51: #{model_forward.5} parent=11 // pred_region
        _
      $region52: #{model_forward.5} parent=11 // pred_fallthru
        _
      // Predicated region
      $region53: #{model_forward.5} parent=11 // pred_check
        %p395 = pneg %p303
      $region54: #{model_forward.5} parent=11 // pred_check_branch
        %397 = sbr.rel (%p395) target = $region56
      $region55: #{model_forward.5} parent=11 // pred_region
        _
      $region56: #{model_forward.5} parent=11 // pred_fallthru
        _
      // Predicated region
      $region57: #{model_forward.5} parent=11 // pred_check
        %p398 = pneg %p324
      $region58: #{model_forward.5} parent=11 // pred_check_branch
        %400 = sbr.rel (%p398) target = $region60
      $region59: #{model_forward.5} parent=11 // pred_region
        _
      $region60: #{model_forward.5} parent=11 // pred_fallthru
        _
    $region12: #{model_forward.5} parent=5 // pred_fallthru
      _
    %p401 = scmp.lt.s32.totalorder %s20, 2
    // Predicated region
    $region61: #{model_forward.5} parent=5 // pred_check
      %p402 = pneg %p401
    $region62: #{model_forward.5} parent=5 // pred_check_branch
      %404 = sbr.rel (%p402) target = $region64
    $region63: #{model_forward.5} parent=5 // pred_region
      // Predicated region
      $region65: #{model_forward.5} parent=63 // pred_check
        %p405 = pneg %p40
      $region66: #{model_forward.5} parent=63 // pred_check_branch
        %407 = sbr.rel (%p405) target = $region68
      $region67: #{model_forward.5} parent=63 // pred_region
        %p408 = scmp.lt.s32.totalorder %s20, 1
        %s409 = scalar_select %p408, %s20, 1
        %s410 = smul.addr %s409, 8
        %s411 = scalar_lea.vmem %s0, %s410
      $region68: #{model_forward.5} parent=63 // pred_fallthru
        _
      // Predicated region
      $region69: #{model_forward.5} parent=63 // pred_check
        %p412 = pneg %p66
      $region70: #{model_forward.5} parent=63 // pred_check_branch
        %414 = sbr.rel (%p412) target = $region72
      $region71: #{model_forward.5} parent=63 // pred_region
        %p415 = scmp.lt.s32.totalorder %s20, 1
        %s416 = scalar_select %p415, %s20, 1
        %s417 = scalar_lea.vmem %s1, %s416
      $region72: #{model_forward.5} parent=63 // pred_fallthru
        _
    $region64: #{model_forward.5} parent=5 // pred_fallthru
      _
    %p418 = scmp.le.s32.totalorder 1, %s20
    %p419 = scmp.lt.s32.totalorder %s20, 3
    %p420 = pnand %p418, %p419
    %p421 = pneg %p420
    // Predicated region
    $region73: #{model_forward.5} parent=5 // pred_check
      _
    $region74: #{model_forward.5} parent=5 // pred_check_branch
      %423 = sbr.rel (%p420) target = $region76
    $region75: #{model_forward.5} parent=5 // pred_region
      %s424 = ssub.s32 %s20, 1
      %p425 = scmp.lt.s32.totalorder %s25, 1
      %s426 = scalar_select %p425, %s25, 1
      %s427 = smul.addr %s426, 8
      %s428 = scalar_lea.vmem %s0, %s427
      %p429 = pneg %p46
      %p430 = pneg %p43
      %p431 = scmp.lt.s32.totalorder %s25, 1
      %s432 = scalar_select %p431, %s25, 1
      %s433 = scalar_lea.vmem %s1, %s432
      %p434 = pneg %p72
      %p435 = pneg %p69
      %p436 = pneg %p93
      %p437 = pneg %p90
      %p438 = pneg %p114
      %p439 = pneg %p111
      %p440 = pneg %p135
      %p441 = pneg %p132
      %p442 = pneg %p156
      %p443 = pneg %p153
      %p444 = pneg %p177
      %p445 = pneg %p174
      %p446 = pneg %p198
      %p447 = pneg %p195
      %p448 = pneg %p219
      %p449 = pneg %p216
      %p450 = pneg %p240
      %p451 = pneg %p237
      %p452 = pneg %p261
      %p453 = pneg %p258
      %p454 = pneg %p282
      %p455 = pneg %p279
      %p456 = pneg %p303
      %p457 = pneg %p300
      %p458 = pneg %p324
      %p459 = pneg %p321
      %p460 = pneg %p350
      %p461 = pneg %p347
      %p462 = scmp.lt.s32.totalorder %s25, 1
      %s463 = scalar_select %p462, %s25, 1
      %s464 = smul.addr %s463, 8
      %s465 = scalar_lea.vmem %s14, %s464
      %p466 = scmp.lt.s32.totalorder %s25, 1
      %s467 = scalar_select %p466, %s25, 1
      %s468 = smul.addr %s467, 8
      %s469 = scalar_lea.vmem %s0, %s468
      %p470 = scmp.lt.s32.totalorder %s25, 1
      %s471 = scalar_select %p470, %s25, 1
      %s472 = scalar_lea.vmem %s1, %s471
      %p473 = scmp.lt.s32.totalorder %s25, 1
      %s474 = scalar_select %p473, %s25, 1
      %s475 = smul.addr %s474, 8
      %s476 = scalar_lea.vmem %s14, %s475
      %v477 = vld [vmem:[%s469] sm:$0xff]
      %v478 = vld [vmem:[%s472] sm:$0x1]
      %v479 = vsub.f32 1.0, %v478
      %v480 = vmul.f32 %v479, -1e+09
      %v481 = vld [vmem:[%s2] sm:$0xff]
      %v482 = vld [vmem:[%s2 + $0x8] sm:$0xff]
      %v483 = vld [vmem:[%s2 + $0x10] sm:$0xff]
      %v484 = vld [vmem:[%s2 + $0x18] sm:$0xff]
      %v485 = vld [vmem:[%s3] sm:$0x1]
      %v487 = vperm.slane %v485, 0
      %vm489 = vcmask 261120
      %v491 = vsel %vm489, %v477, 0
      %493 = vmatpush.msra.mxu0 0.0
      %494 = vmatpush.msra.mxu0 0.0
      %495 = vmatpush.msra.mxu0 0.0
      %496 = vmatpush.msra.mxu0 0.0
      %497 = vmatpush.msra.mxu0 0.0
      %498 = vmatpush.msra.mxu0 0.0
      %499 = vmatpush.msra.mxu0 0.0
      %500 = vmatpush.msra.mxu0 0.0
      %501 = vmatpush.msra.mxu0 0.0
      %502 = vmatpush.msra.mxu0 0.0
      %503 = vmatpush.msra.mxu0 0.0
      %504 = vmatpush.msra.mxu0 0.0
      %505 = vmatpush.msra.mxu0 %v484
      %506 = vmatpush.msra.mxu0 %v483
      %507 = vmatpush.msra.mxu0 %v482
      %508 = vmatpush.msra.mxu0 %v481
      %509 = vmatmul.f32.gmra.mxu0 %v491
      %v510 = vpop.f32.mrf.mxu0
      %v511 = vadd.f32 %v487, %v510
      %512 = vdwg.mxu0
      %514 = vrot.lane.b32.xlu0 %v511, 96
      %v515 = vpop.permute.xlu0 %514
      %vm516 = vcmask 64512
      %v517 = vsel %vm516, %v511, 0
      %v519 = vsel %vm516, %v515, 0
      %521 = vmatpush.xpose.msra.mxu0 0.0
      %522 = vmatpush.xpose.msra.mxu0 0.0
      %523 = vmatpush.xpose.msra.mxu0 0.0
      %524 = vmatpush.xpose.msra.mxu0 0.0
      %525 = vmatpush.xpose.msra.mxu0 0.0
      %526 = vmatpush.xpose.msra.mxu0 0.0
      %527 = vmatpush.xpose.msra.mxu0 0.0
      %528 = vmatpush.xpose.msra.mxu0 0.0
      %529 = vmatpush.xpose.msra.mxu0 0.0
      %530 = vmatpush.xpose.msra.mxu0 0.0
      %531 = vmatpush.xpose.msra.mxu0 0.0
      %532 = vmatpush.xpose.msra.mxu0 0.0
      %533 = vmatpush.xpose.msra.mxu0 0.0
      %534 = vmatpush.xpose.msra.mxu0 0.0
      %535 = vmatpush.xpose.msra.mxu0 0.0
      %536 = vmatpush.xpose.msra.mxu0 %v519
      %537 = vmatmul.f32.gmra.mxu0 %v517
      %v538 = vpop.f32.mrf.mxu0
      %v539 = vadd.f32 0.0, %v538
      %540 = vdwg.mxu0
      %v541 = vmul.f32 %v539, 0.35355338
      %v543 = vperm.slane %v480, 0
      %v545 = vadd.f32 %v541, %v543
      %v546 = vsel %vm516, %v545, -inf
      %547 = vmax.xlane.f32.xlu0 %v546
      %v548 = vpop.xlane.xlu0 %547
      %v549 = vsub.f32 %v545, %v548
      %v550 = vmul.f32 %v549, 1.442695
      %v551 = vpow.pop %v550
      %v552 = vsel %vm516, %v551, 0.0
      %553 = vadd.xlane.f32.xlu0 %v552
      %v554 = vpop.xlane.xlu0 %553
      %v555 = vrcp.pop %v554
      %v556 = vmul.f32 %v551, %v555
      %557 = vrot.lane.b32.xlu0 %v511, 64
      %v558 = vpop.permute.xlu0 %557
      %v561 = vsel %vm516, %v556, 0
      %563 = vmatpush.msra.mxu0 0.0
      %564 = vmatpush.msra.mxu0 0.0
      %565 = vmatpush.msra.mxu0 0.0
      %566 = vmatpush.msra.mxu0 0.0
      %567 = vmatpush.msra.mxu0 0.0
      %568 = vmatpush.msra.mxu0 0.0
      %569 = vmatpush.msra.mxu0 0.0
      %570 = vmatpush.msra.mxu0 0.0
      %571 = vmatpush.msra.mxu0 0.0
      %572 = vmatpush.msra.mxu0 0.0
      %573 = vmatpush.msra.mxu0 0.0
      %574 = vmatpush.msra.mxu0 0.0
      %575 = vmatpush.msra.mxu0 0.0
      %576 = vmatpush.msra.mxu0 0.0
      %577 = vmatpush.msra.mxu0 0.0
      %578 = vmatpush.msra.mxu0 %v558
      %579 = vmatmul.f32.gmra.mxu0 %v561
      %v580 = vpop.f32.mrf.mxu0
      %v581 = vadd.f32 0.0, %v580
      %582 = vdwg.mxu0
      %583 = vrot.lane.b32.xlu0 %v511, 120
      %v584 = vpop.permute.xlu0 %583
      %585 = vrot.lane.b32.xlu0 %v511, 88
      %v586 = vpop.permute.xlu0 %585
      %v587 = vsel %vm516, %v584, 0
      %v589 = vsel %vm516, %v586, 0
      %591 = vmatpush.xpose.msra.mxu0 0.0
      %592 = vmatpush.xpose.msra.mxu0 0.0
      %593 = vmatpush.xpose.msra.mxu0 0.0
      %594 = vmatpush.xpose.msra.mxu0 0.0
      %595 = vmatpush.xpose.msra.mxu0 0.0
      %596 = vmatpush.xpose.msra.mxu0 0.0
      %597 = vmatpush.xpose.msra.mxu0 0.0
      %598 = vmatpush.xpose.msra.mxu0 0.0
      %599 = vmatpush.xpose.msra.mxu0 0.0
      %600 = vmatpush.xpose.msra.mxu0 0.0
      %601 = vmatpush.xpose.msra.mxu0 0.0
      %602 = vmatpush.xpose.msra.mxu0 0.0
      %603 = vmatpush.xpose.msra.mxu0 0.0
      %604 = vmatpush.xpose.msra.mxu0 0.0
      %605 = vmatpush.xpose.msra.mxu0 0.0
      %606 = vmatpush.xpose.msra.mxu0 %v589
      %607 = vmatmul.f32.gmra.mxu0 %v587
      %v608 = vpop.f32.mrf.mxu0
      %v609 = vadd.f32 0.0, %v608
      %610 = vdwg.mxu0
      %v611 = vmul.f32 %v609, 0.35355338
      %v612 = vadd.f32 %v611, %v543
      %v613 = vsel %vm516, %v612, -inf
      %614 = vmax.xlane.f32.xlu0 %v613
      %v615 = vpop.xlane.xlu0 %614
      %v616 = vsub.f32 %v612, %v615
      %v617 = vmul.f32 %v616, 1.442695
      %v618 = vpow.pop %v617
      %v619 = vsel %vm516, %v618, 0.0
      %620 = vadd.xlane.f32.xlu0 %v619
      %v621 = vpop.xlane.xlu0 %620
      %v622 = vrcp.pop %v621
      %v623 = vmul.f32 %v618, %v622
      %624 = vrot.lane.b32.xlu0 %v511, 56
      %v625 = vpop.permute.xlu0 %624
      %v628 = vsel %vm516, %v623, 0
      %630 = vmatpush.msra.mxu0 0.0
      %631 = vmatpush.msra.mxu0 0.0
      %632 = vmatpush.msra.mxu0 0.0
      %633 = vmatpush.msra.mxu0 0.0
      %634 = vmatpush.msra.mxu0 0.0
      %635 = vmatpush.msra.mxu0 0.0
      %636 = vmatpush.msra.mxu0 0.0
      %637 = vmatpush.msra.mxu0 0.0
      %638 = vmatpush.msra.mxu0 0.0
      %639 = vmatpush.msra.mxu0 0.0
      %640 = vmatpush.msra.mxu0 0.0
      %641 = vmatpush.msra.mxu0 0.0
      %642 = vmatpush.msra.mxu0 0.0
      %643 = vmatpush.msra.mxu0 0.0
      %644 = vmatpush.msra.mxu0 0.0
      %645 = vmatpush.msra.mxu0 %v625
      %646 = vmatmul.f32.gmra.mxu0 %v628
      %v647 = vpop.f32.mrf.mxu0
      %v648 = vadd.f32 0.0, %v647
      %649 = vdwg.mxu0
      %650 = vrot.lane.b32.xlu0 %v511, 112
      %v651 = vpop.permute.xlu0 %650
      %652 = vrot.lane.b32.xlu0 %v511, 80
      %v653 = vpop.permute.xlu0 %652
      %v654 = vsel %vm516, %v651, 0
      %v656 = vsel %vm516, %v653, 0
      %658 = vmatpush.xpose.msra.mxu0 0.0
      %659 = vmatpush.xpose.msra.mxu0 0.0
      %660 = vmatpush.xpose.msra.mxu0 0.0
      %661 = vmatpush.xpose.msra.mxu0 0.0
      %662 = vmatpush.xpose.msra.mxu0 0.0
      %663 = vmatpush.xpose.msra.mxu0 0.0
      %664 = vmatpush.xpose.msra.mxu0 0.0
      %665 = vmatpush.xpose.msra.mxu0 0.0
      %666 = vmatpush.xpose.msra.mxu0 0.0
      %667 = vmatpush.xpose.msra.mxu0 0.0
      %668 = vmatpush.xpose.msra.mxu0 0.0
      %669 = vmatpush.xpose.msra.mxu0 0.0
      %670 = vmatpush.xpose.msra.mxu0 0.0
      %671 = vmatpush.xpose.msra.mxu0 0.0
      %672 = vmatpush.xpose.msra.mxu0 0.0
      %673 = vmatpush.xpose.msra.mxu0 %v656
      %674 = vmatmul.f32.gmra.mxu0 %v654
      %v675 = vpop.f32.mrf.mxu0
      %v676 = vadd.f32 0.0, %v675
      %677 = vdwg.mxu0
      %v678 = vmul.f32 %v676, 0.35355338
      %v679 = vadd.f32 %v678, %v543
      %v680 = vsel %vm516, %v679, -inf
      %681 = vmax.xlane.f32.xlu0 %v680
      %v682 = vpop.xlane.xlu0 %681
      %v683 = vsub.f32 %v679, %v682
      %v684 = vmul.f32 %v683, 1.442695
      %v685 = vpow.pop %v684
      %v686 = vsel %vm516, %v685, 0.0
      %687 = vadd.xlane.f32.xlu0 %v686
      %v688 = vpop.xlane.xlu0 %687
      %v689 = vrcp.pop %v688
      %v690 = vmul.f32 %v685, %v689
      %691 = vrot.lane.b32.xlu0 %v511, 48
      %v692 = vpop.permute.xlu0 %691
      %v695 = vsel %vm516, %v690, 0
      %697 = vmatpush.msra.mxu0 0.0
      %698 = vmatpush.msra.mxu0 0.0
      %699 = vmatpush.msra.mxu0 0.0
      %700 = vmatpush.msra.mxu0 0.0
      %701 = vmatpush.msra.mxu0 0.0
      %702 = vmatpush.msra.mxu0 0.0
      %703 = vmatpush.msra.mxu0 0.0
      %704 = vmatpush.msra.mxu0 0.0
      %705 = vmatpush.msra.mxu0 0.0
      %706 = vmatpush.msra.mxu0 0.0
      %707 = vmatpush.msra.mxu0 0.0
      %708 = vmatpush.msra.mxu0 0.0
      %709 = vmatpush.msra.mxu0 0.0
      %710 = vmatpush.msra.mxu0 0.0
      %711 = vmatpush.msra.mxu0 0.0
      %712 = vmatpush.msra.mxu0 %v692
      %713 = vmatmul.f32.gmra.mxu0 %v695
      %v714 = vpop.f32.mrf.mxu0
      %v715 = vadd.f32 0.0, %v714
      %716 = vdwg.mxu0
      %717 = vrot.lane.b32.xlu0 %v511, 104
      %v718 = vpop.permute.xlu0 %717
      %719 = vrot.lane.b32.xlu0 %v511, 72
      %v720 = vpop.permute.xlu0 %719
      %v721 = vsel %vm516, %v718, 0
      %v723 = vsel %vm516, %v720, 0
      %725 = vmatpush.xpose.msra.mxu0 0.0
      %726 = vmatpush.xpose.msra.mxu0 0.0
      %727 = vmatpush.xpose.msra.mxu0 0.0
      %728 = vmatpush.xpose.msra.mxu0 0.0
      %729 = vmatpush.xpose.msra.mxu0 0.0
      %730 = vmatpush.xpose.msra.mxu0 0.0
      %731 = vmatpush.xpose.msra.mxu0 0.0
      %732 = vmatpush.xpose.msra.mxu0 0.0
      %733 = vmatpush.xpose.msra.mxu0 0.0
      %734 = vmatpush.xpose.msra.mxu0 0.0
      %735 = vmatpush.xpose.msra.mxu0 0.0
      %736 = vmatpush.xpose.msra.mxu0 0.0
      %737 = vmatpush.xpose.msra.mxu0 0.0
      %738 = vmatpush.xpose.msra.mxu0 0.0
      %739 = vmatpush.xpose.msra.mxu0 0.0
      %740 = vmatpush.xpose.msra.mxu0 %v723
      %741 = vmatmul.f32.gmra.mxu0 %v721
      %v742 = vpop.f32.mrf.mxu0
      %v743 = vadd.f32 0.0, %v742
      %744 = vdwg.mxu0
      %v745 = vmul.f32 %v743, 0.35355338
      %v746 = vadd.f32 %v745, %v543
      %v747 = vsel %vm516, %v746, -inf
      %748 = vmax.xlane.f32.xlu0 %v747
      %v749 = vpop.xlane.xlu0 %748
      %v750 = vsub.f32 %v746, %v749
      %v751 = vmul.f32 %v750, 1.442695
      %v752 = vpow.pop %v751
      %v753 = vsel %vm516, %v752, 0.0
      %754 = vadd.xlane.f32.xlu0 %v753
      %v755 = vpop.xlane.xlu0 %754
      %v756 = vrcp.pop %v755
      %v757 = vmul.f32 %v752, %v756
      %758 = vrot.lane.b32.xlu0 %v511, 40
      %v759 = vpop.permute.xlu0 %758
      %v762 = vsel %vm516, %v757, 0
      %764 = vmatpush.msra.mxu0 0.0
      %765 = vmatpush.msra.mxu0 0.0
      %766 = vmatpush.msra.mxu0 0.0
      %767 = vmatpush.msra.mxu0 0.0
      %768 = vmatpush.msra.mxu0 0.0
      %769 = vmatpush.msra.mxu0 0.0
      %770 = vmatpush.msra.mxu0 0.0
      %771 = vmatpush.msra.mxu0 0.0
      %772 = vmatpush.msra.mxu0 0.0
      %773 = vmatpush.msra.mxu0 0.0
      %774 = vmatpush.msra.mxu0 0.0
      %775 = vmatpush.msra.mxu0 0.0
      %776 = vmatpush.msra.mxu0 0.0
      %777 = vmatpush.msra.mxu0 0.0
      %778 = vmatpush.msra.mxu0 0.0
      %779 = vmatpush.msra.mxu0 %v759
      %780 = vmatmul.f32.gmra.mxu0 %v762
      %v781 = vpop.f32.mrf.mxu0
      %v782 = vadd.f32 0.0, %v781
      %783 = vdwg.mxu0
      %785 = vrot.lane.b32.xlu0 %v648, 8
      %v786 = vpop.permute.xlu0 %785
      %789 = vrot.lane.b32.xlu0 %v715, 16
      %v790 = vpop.permute.xlu0 %789
      %793 = vrot.lane.b32.xlu0 %v782, 24
      %v794 = vpop.permute.xlu0 %793
      %v796 = vsel %vm516, %v581, %v786
      %vm797 = vcmask 130048
      %v798 = vsel %vm797, %v796, %v790
      %vm799 = vcmask 195584
      %v800 = vsel %vm799, %v798, %v794
      %v801 = vld [vmem:[%s4] sm:$0xff]
      %v802 = vld [vmem:[%s4 + $0x8] sm:$0xff]
      %v803 = vld [vmem:[%s4 + $0x10] sm:$0xff]
      %v804 = vld [vmem:[%s4 + $0x18] sm:$0xff]
      %v805 = vld [vmem:[%s5] sm:$0x1]
      %v807 = vperm.slane %v805, 0
      %v810 = vsel %vm489, %v800, 0
      %812 = vmatpush.msra.mxu0 0.0
      %813 = vmatpush.msra.mxu0 0.0
      %814 = vmatpush.msra.mxu0 0.0
      %815 = vmatpush.msra.mxu0 0.0
      %816 = vmatpush.msra.mxu0 0.0
      %817 = vmatpush.msra.mxu0 0.0
      %818 = vmatpush.msra.mxu0 0.0
      %819 = vmatpush.msra.mxu0 0.0
      %820 = vmatpush.msra.mxu0 0.0
      %821 = vmatpush.msra.mxu0 0.0
      %822 = vmatpush.msra.mxu0 0.0
      %823 = vmatpush.msra.mxu0 0.0
      %824 = vmatpush.msra.mxu0 %v804
      %825 = vmatpush.msra.mxu0 %v803
      %826 = vmatpush.msra.mxu0 %v802
      %827 = vmatpush.msra.mxu0 %v801
      %828 = vmatmul.f32.gmra.mxu0 %v810
      %v829 = vpop.f32.mrf.mxu0
      %v830 = vadd.f32 %v807, %v829
      %831 = vdwg.mxu0
      %v832 = vadd.f32 %v477, %v830
      %v833 = vld [vmem:[%s6] sm:$0x1]
      %v834 = vld [vmem:[%s7] sm:$0x1]
      %v835 = vsel %vm489, %v832, 0.0
      %836 = vadd.xlane.f32.xlu0 %v835
      %v837 = vpop.xlane.xlu0 %836
      %v838 = vrcp.pop 32.0
      %v839 = vmul.f32 32.0, %v838
      %v840 = vsub.f32 1.0, %v839
      %v841 = vmul.f32 %v838, %v840
      %v842 = vadd.f32 %v838, %v841
      %vm843 = vweird.f32 %v838
      %v844 = vsel %vm843, %v838, %v842
      %v845 = vmul.f32 %v837, %v844
      %v846 = vsub.f32 %v832, %v845
      %v847 = vmul.f32 %v846, %v846
      %v848 = vsel %vm489, %v847, 0.0
      %849 = vadd.xlane.f32.xlu0 %v848
      %v850 = vpop.xlane.xlu0 %849
      %v851 = vmul.f32 %v850, %v844
      %v852 = vadd.f32 %v851, 1e-07
      %v853 = vrsqrt.pop %v852
      %v854 = vmul.f32 %v853, %v852
      %v855 = vmul.f32 %v854, %v853
      %v856 = vmul.f32 0.5, %v855
      %v857 = vsub.f32 1.5, %v856
      %v858 = vmul.f32 %v853, %v857
      %vm859 = vweird.f32 %v852
      %vm860 = vweird.f32 %v853
      %vm861 = vmor %vm859, %vm860
      %v862 = vsel %vm861, %v853, %v858
      %v863 = vmul.f32 %v846, %v862
      %v865 = vperm.slane %v833, 0
      %v867 = vmul.f32 %v863, %v865
      %v869 = vperm.slane %v834, 0
      %v871 = vadd.f32 %v867, %v869
      %v872 = vld [vmem:[%s8] sm:$0xff]
      %v873 = vld [vmem:[%s8 + $0x8] sm:$0xff]
      %v874 = vld [vmem:[%s8 + $0x10] sm:$0xff]
      %v875 = vld [vmem:[%s8 + $0x18] sm:$0xff]
      %v876 = vld [vmem:[%s9] sm:$0x1]
      %v878 = vperm.slane %v876, 0
      %v881 = vsel %vm489, %v871, 0
      %883 = vmatpush.msra.mxu0 0.0
      %884 = vmatpush.msra.mxu0 0.0
      %885 = vmatpush.msra.mxu0 0.0
      %886 = vmatpush.msra.mxu0 0.0
      %887 = vmatpush.msra.mxu0 0.0
      %888 = vmatpush.msra.mxu0 0.0
      %889 = vmatpush.msra.mxu0 0.0
      %890 = vmatpush.msra.mxu0 0.0
      %891 = vmatpush.msra.mxu0 0.0
      %892 = vmatpush.msra.mxu0 0.0
      %893 = vmatpush.msra.mxu0 0.0
      %894 = vmatpush.msra.mxu0 0.0
      %895 = vmatpush.msra.mxu0 %v875
      %896 = vmatpush.msra.mxu0 %v874
      %897 = vmatpush.msra.mxu0 %v873
      %898 = vmatpush.msra.mxu0 %v872
      %899 = vmatmul.f32.gmra.mxu0 %v881
      %v900 = vpop.f32.mrf.mxu0
      %v901 = vadd.f32 %v878, %v900
      %902 = vdwg.mxu0
      %v903 = vmul.f32 %v901, 0.5
      %v904 = vmul.f32 %v901, 0.044715
      %v905 = vmul.f32 %v904, %v901
      %v906 = vmul.f32 %v905, %v901
      %v907 = vadd.f32 %v901, %v906
      %v908 = vmul.f32 %v907, 0.7978846
      %v909 = vtanh.pop %v908
      %v910 = vadd.f32 %v909, 1.0
      %v911 = vmul.f32 %v903, %v910
      %v912 = vld [vmem:[%s10] sm:$0xff]
      %v913 = vld [vmem:[%s10 + $0x8] sm:$0xff]
      %v914 = vld [vmem:[%s10 + $0x10] sm:$0xff]
      %v915 = vld [vmem:[%s10 + $0x18] sm:$0xff]
      %v916 = vld [vmem:[%s10 + $0x20] sm:$0xff]
      %v917 = vld [vmem:[%s10 + $0x28] sm:$0xff]
      %v918 = vld [vmem:[%s10 + $0x30] sm:$0xff]
      %v919 = vld [vmem:[%s10 + $0x38] sm:$0xff]
      %v920 = vld [vmem:[%s11] sm:$0x1]
      %v922 = vperm.slane %v920, 0
      %vm924 = vcmask 523264
      %v926 = vsel %vm924, %v911, 0
      %928 = vmatpush.msra.mxu0 0.0
      %929 = vmatpush.msra.mxu0 0.0
      %930 = vmatpush.msra.mxu0 0.0
      %931 = vmatpush.msra.mxu0 0.0
      %932 = vmatpush.msra.mxu0 0.0
      %933 = vmatpush.msra.mxu0 0.0
      %934 = vmatpush.msra.mxu0 0.0
      %935 = vmatpush.msra.mxu0 0.0
      %936 = vmatpush.msra.mxu0 %v919
      %937 = vmatpush.msra.mxu0 %v918
      %938 = vmatpush.msra.mxu0 %v917
      %939 = vmatpush.msra.mxu0 %v916
      %940 = vmatpush.msra.mxu0 %v915
      %941 = vmatpush.msra.mxu0 %v914
      %942 = vmatpush.msra.mxu0 %v913
      %943 = vmatpush.msra.mxu0 %v912
      %944 = vmatmul.f32.gmra.mxu0 %v926
      %v945 = vpop.f32.mrf.mxu0
      %v946 = vadd.f32 %v922, %v945
      %947 = vdwg.mxu0
      %v948 = vadd.f32 %v871, %v946
      %v949 = vld [vmem:[%s12] sm:$0x1]
      %v950 = vld [vmem:[%s13] sm:$0x1]
      %v951 = vsel %vm489, %v948, 0.0
      %952 = vadd.xlane.f32.xlu0 %v951
      %v953 = vpop.xlane.xlu0 %952
      %v954 = vmul.f32 %v953, %v844
      %v955 = vsub.f32 %v948, %v954
      %v956 = vmul.f32 %v955, %v955
      %v957 = vsel %vm489, %v956, 0.0
      %958 = vadd.xlane.f32.xlu0 %v957
      %v959 = vpop.xlane.xlu0 %958
      %v960 = vmul.f32 %v959, %v844
      %v961 = vadd.f32 %v960, 1e-07
      %v962 = vrsqrt.pop %v961
      %v963 = vmul.f32 %v962, %v961
      %v964 = vmul.f32 %v963, %v962
      %v965 = vmul.f32 0.5, %v964
      %v966 = vsub.f32 1.5, %v965
      %v967 = vmul.f32 %v962, %v966
      %vm968 = vweird.f32 %v961
      %vm969 = vweird.f32 %v962
      %vm970 = vmor %vm968, %vm969
      %v971 = vsel %vm970, %v962, %v967
      %v972 = vmul.f32 %v955, %v971
      %v974 = vperm.slane %v949, 0
      %v976 = vmul.f32 %v972, %v974
      %v978 = vperm.slane %v950, 0
      %v980 = vadd.f32 %v976, %v978
      %981 = vst.msk [vmem:[%s476] sm:$0xff] %vm489, %v980
      %p982 = scmp.lt.s32.totalorder %s25, 1
      %s983 = scalar_select %p982, %s25, 1
      %s984 = smul.addr %s983, 8
      %s985 = scalar_lea.vmem %s14, %s984
      // Predicated region
      $region77: #{model_forward.5} parent=75 // pred_check
        %p986 = pneg %p347
      $region78: #{model_forward.5} parent=75 // pred_check_branch
        %988 = sbr.rel (%p986) target = $region80
      $region79: #{model_forward.5} parent=75 // pred_region
        _
      $region80: #{model_forward.5} parent=75 // pred_fallthru
        _
    $region76: #{model_forward.5} parent=5 // pred_fallthru
      _
    %p989 = scmp.le.s32.totalorder 2, %s20
    // Predicated region
    $region81: #{model_forward.5} parent=5 // pred_check
      %p990 = pneg %p989
    $region82: #{model_forward.5} parent=5 // pred_check_branch
      %992 = sbr.rel (%p990) target = $region84
    $region83: #{model_forward.5} parent=5 // pred_region
      %s993 = ssub.s32 %s20, 2
      // Predicated region
      $region85: #{model_forward.5} parent=83 // pred_check
        %p994 = pneg %p353
      $region86: #{model_forward.5} parent=83 // pred_check_branch
        %996 = sbr.rel (%p994) target = $region88
      $region87: #{model_forward.5} parent=83 // pred_region
        %p997 = scmp.lt.s32.totalorder %s26, 1
        %s998 = scalar_select %p997, %s26, 1
        %s999 = smul.addr %s998, 8
        %s1000 = scalar_lea.vmem %s14, %s999
      $region88: #{model_forward.5} parent=83 // pred_fallthru
        _
    $region84: #{model_forward.5} parent=5 // pred_fallthru
      _
  $region6: #{model_forward.5} parent=0 // loop_footer
    %s24 = sadd.s32 1, %s20
  $region7: #{model_forward.5} parent=0 // loop_footer_branch
    %19 = sbr.rel target = $region3
  $region8: #{model_forward.5} parent=0 // loop_exit
    _

</llo_original>
